<compile_context>
chip_gen: v7x
topology: tpu7x:2x2x1
jax: 0.10.0
libtpu: 0.0.40
codegen_flags: <defaults>
</compile_context>

<pallas_src>
import math

import jax
import jax.numpy as jnp
from jax.experimental import pallas as pl
from jax.experimental.pallas import tpu as pltpu


def _sdpa_kernel(q_ref, k_ref, v_ref, mask_ref, ctx_ref, attn_ref):
    # Grid point (b, h, qi): one TQ-row query tile of one attention head.
    q = q_ref[0, 0]        # (TQ, D)
    k = k_ref[0, 0]        # (Sk, D)  resident in VMEM across the qi loop
    v = v_ref[0, 0]        # (Sk, D)  resident in VMEM across the qi loop
    m = mask_ref[0, 0]     # (TQ, Sk) int8, nonzero == masked

    # Fold 1/sqrt(d_k) into the small (TQ, D) q tile — Sk/D fewer VPU multiplies
    # than scaling the (TQ, Sk) scores. Keep the operand dtype so bf16 stays bf16.
    d_k = q.shape[-1]
    q = (q * (1.0 / math.sqrt(d_k))).astype(q_ref.dtype)

    # For f32 operands force the accurate multi-pass MXU matmul (matches an f32
    # reference); bf16 operands natively take the fast bf16 MXU path.
    qk_prec = (jax.lax.Precision.HIGHEST if q.dtype == jnp.float32
               else jax.lax.Precision.DEFAULT)
    pv_prec = (jax.lax.Precision.HIGHEST if v.dtype == jnp.float32
               else jax.lax.Precision.DEFAULT)

    # Q @ K^T: contract the D axes directly (no materialized K^T), f32 accumulation.
    scores = jax.lax.dot_general(
        q, k, (((1,), (1,)), ((), ())),
        precision=qk_prec, preferred_element_type=jnp.float32)

    # masked_fill_(attn_mask, 1e-9): faithful to the PyTorch code (1e-9, not -inf).
    scores = jnp.where(m != 0, jnp.float32(1e-9), scores)

    # Numerically stable softmax; exact divide so the stored attn rows sum to 1.
    s_max = jnp.max(scores, axis=-1, keepdims=True)
    e = jnp.exp(scores - s_max)
    attn = e / jnp.sum(e, axis=-1, keepdims=True)

    # attn @ V: operands in V's dtype (bf16 MXU when V is bf16), f32 accumulation.
    ctx = jnp.dot(attn.astype(v_ref.dtype), v,
                  precision=pv_prec, preferred_element_type=jnp.float32)

    ctx_ref[0, 0] = ctx.astype(ctx_ref.dtype)
    attn_ref[0, 0] = attn.astype(attn_ref.dtype)


def scale_dot_product_attention(q, k, v, attn_mask, *, tq=128,
                                attn_dtype=None, vmem_limit_bytes=None):
    """Q: [B,H,Sq,D]; K, V: [B,H,Sk,D]; attn_mask: [B|1, H|1, Sq, Sk] (True = masked).

    tq: query-tile rows. 128 keeps per-step VMEM inside v7x's 64 MiB even for
        long Sk; on v5e/v6e (128 MiB VMEM) pass tq=256..512 together with a
        larger vmem_limit_bytes (fewer grid steps, larger mask/attn DMAs).
    attn_dtype: dtype of the returned attention matrix (defaults to Q's dtype,
        so bf16 inputs emit bf16 attn and halve the dominant HBM writeback).
    """
    B, H, Sq, D = q.shape
    Sk = k.shape[2]

    if attn_mask.ndim != 4:
        attn_mask = attn_mask.reshape((1,) * (4 - attn_mask.ndim) + attn_mask.shape)
    assert attn_mask.shape[0] in (1, B) and attn_mask.shape[1] in (1, H)
    assert attn_mask.shape[2] == Sq and attn_mask.shape[3] == Sk
    attn_dtype = q.dtype if attn_dtype is None else attn_dtype

    # int8 mask: 4x less HBM/VMEM traffic than int32/bool32.
    # TODO(synk): bit-pack the mask (1 bit/elem) and expand in-kernel for a
    # further 8x when the mask cannot be batch/head-broadcast.
    mask_i8 = attn_mask.astype(jnp.int8)

    # Ragged Sq: pad up to a multiple of the query tile instead of silently
    # reverting to a whole-Sq block (which blows VMEM for large Sq).
    tq = min(tq, Sq)
    sq_pad = Sq
    if Sq % tq != 0:
        sq_pad = ((Sq + tq - 1) // tq) * tq
        pad = sq_pad - Sq
        q = jnp.pad(q, ((0, 0), (0, 0), (0, pad), (0, 0)))
        mask_i8 = jnp.pad(mask_i8, ((0, 0), (0, 0), (0, pad), (0, 0)))
    n_q = sq_pad // tq

    b_bcast = attn_mask.shape[0] == 1
    h_bcast = attn_mask.shape[1] == 1

    grid = (B, H, n_q)

    q_spec = pl.BlockSpec((1, 1, tq, D), lambda b, h, qi: (b, h, qi, 0))
    # K/V index_maps ignore qi -> blocks stay resident in VMEM across the whole
    # query loop of each (b, h) (no re-DMA per query tile).
    kv_spec = pl.BlockSpec((1, 1, Sk, D), lambda b, h, qi: (b, h, 0, 0))
    # Broadcast masks stay resident across the b/h axes they do not depend on.
    mask_spec = pl.BlockSpec(
        (1, 1, tq, Sk),
        lambda b, h, qi: (0 if b_bcast else b, 0 if h_bcast else h, qi, 0))
    ctx_spec = pl.BlockSpec((1, 1, tq, D), lambda b, h, qi: (b, h, qi, 0))
    attn_spec = pl.BlockSpec((1, 1, tq, Sk), lambda b, h, qi: (b, h, qi, 0))

    if vmem_limit_bytes is None:
        # Safe on every generation (v7x physical VMEM is 64 MiB); v5e/v6e
        # callers may raise this to ~96 MiB together with a larger tq.
        vmem_limit_bytes = 48 * 1024 * 1024

    ctx, attn = pl.pallas_call(
        _sdpa_kernel,
        out_shape=(
            jax.ShapeDtypeStruct((B, H, sq_pad, D), q.dtype),
            jax.ShapeDtypeStruct((B, H, sq_pad, Sk), attn_dtype),
        ),
        grid_spec=pltpu.PrefetchScalarGridSpec(
            num_scalar_prefetch=0,
            grid=grid,
            in_specs=[q_spec, kv_spec, kv_spec, mask_spec],
            out_specs=(ctx_spec, attn_spec),
        ),
        compiler_params=pltpu.CompilerParams(
            # B, H and the query-tile axis are all independent -> shard across
            # TensorCores on v7x (neutral on single-TC v5e/v6e).
            dimension_semantics=("parallel", "parallel", "parallel"),
            vmem_limit_bytes=vmem_limit_bytes,
        ),
    )(q, k, v, mask_i8)

    if sq_pad != Sq:
        ctx = ctx[:, :, :Sq, :]
        attn = attn[:, :, :Sq, :]
    return ctx, attn


def _reference(q, k, v, attn_mask):
    """Pure-JAX f32 reference with the same (buggy-but-faithful) 1e-9 fill."""
    d_k = q.shape[-1]
    scores = jnp.einsum("bhqd,bhkd->bhqk", q, k,
                        precision=jax.lax.Precision.HIGHEST) / math.sqrt(d_k)
    scores = jnp.where(attn_mask, jnp.float32(1e-9), scores)
    attn = jax.nn.softmax(scores, axis=-1)
    ctx = jnp.einsum("bhqk,bhkd->bhqd", attn, v,
                     precision=jax.lax.Precision.HIGHEST)
    return ctx, attn


if __name__ == "__main__":
    # Small demo shapes. Real workloads should use D / Sk as multiples of 128
    # for lane-dense (unmasked) ctx / attn stores.
    B, H, Sq, Sk, D = 2, 2, 8, 8, 32
    key = jax.random.PRNGKey(0)
    kq, kk, kv, km = jax.random.split(key, 4)

    q = jax.random.normal(kq, (B, H, Sq, D), dtype=jnp.float32)
    k = jax.random.normal(kk, (B, H, Sk, D), dtype=jnp.float32)
    v = jax.random.normal(kv, (B, H, Sk, D), dtype=jnp.float32)
    attn_mask = jax.random.bernoulli(km, 0.25, (B, H, Sq, Sk))

    # --- f32 path: exact softmax + HIGHEST-precision MXU -> tight check. ---
    ctx, attn = scale_dot_product_attention(q, k, v, attn_mask)
    jax.block_until_ready((ctx, attn))
    ctx_ref, attn_ref = _reference(q, k, v, attn_mask)
    assert jnp.allclose(ctx, ctx_ref, atol=1e-4, rtol=1e-4), "f32 ctx mismatch"
    assert jnp.allclose(attn, attn_ref, atol=1e-4, rtol=1e-4), "f32 attn mismatch"

    # --- bf16 fast path: bf16 MXU operands, bf16 attn writeback, head-broadcast
    # mask. Loose tolerance: bf16 has ~2^-8 relative precision. ---
    qb, kb, vb = (x.astype(jnp.bfloat16) for x in (q, k, v))
    mask_h_shared = attn_mask[:, :1]  # [B,1,Sq,Sk] exercises the broadcast path
    ctx_b, attn_b = scale_dot_product_attention(qb, kb, vb, mask_h_shared)
    jax.block_until_ready((ctx_b, attn_b))
    ctx_ref_b, attn_ref_b = _reference(
        qb.astype(jnp.float32), kb.astype(jnp.float32), vb.astype(jnp.float32),
        mask_h_shared)
    assert jnp.allclose(ctx_b.astype(jnp.float32), ctx_ref_b,
                        atol=1e-1, rtol=1e-1), "bf16 ctx mismatch"
    assert jnp.allclose(attn_b.astype(jnp.float32), attn_ref_b,
                        atol=1e-1, rtol=1e-1), "bf16 attn mismatch"

    print("KERNEL_OK")
</pallas_src>

<mosaic_0001>
module attributes {stable_mosaic.version = 11 : i64} {
  func.func @_sdpa_kernel(%arg0: i32, %arg1: i32, %arg2: i32, %arg3: memref<1x1x8x32xf32, #tpu.memory_space<vmem>>, %arg4: memref<1x1x8x32xf32, #tpu.memory_space<vmem>>, %arg5: memref<1x1x8x32xf32, #tpu.memory_space<vmem>>, %arg6: memref<1x1x8x8xi8, #tpu.memory_space<vmem>>, %arg7: memref<1x1x8x32xf32, #tpu.memory_space<vmem>>, %arg8: memref<1x1x8x8xf32, #tpu.memory_space<vmem>>) attributes {dimension_semantics = [#tpu.dimension_semantics<parallel>, #tpu.dimension_semantics<parallel>, #tpu.dimension_semantics<parallel>], iteration_bounds = array<i64: 2, 2, 1>, scalar_prefetch = 0 : i64, scratch_operands = 0 : i64, tpu.core_type = #tpu.core_type<tc>, window_params = [{transform_indices = @transform_0, window_bounds = array<i64: 1, 1, 8, 32>}, {transform_indices = @transform_1, window_bounds = array<i64: 1, 1, 8, 32>}, {transform_indices = @transform_2, window_bounds = array<i64: 1, 1, 8, 32>}, {transform_indices = @transform_3, window_bounds = array<i64: 1, 1, 8, 8>}, {transform_indices = @transform_4, window_bounds = array<i64: 1, 1, 8, 32>}, {transform_indices = @transform_5, window_bounds = array<i64: 1, 1, 8, 8>}]} {
    %c0 = arith.constant 0 : index
    %c0_0 = arith.constant 0 : index
    %c0_1 = arith.constant 0 : index
    %c0_2 = arith.constant 0 : index
    %0 = vector.load %arg3[%c0, %c0_0, %c0_1, %c0_2] : memref<1x1x8x32xf32, #tpu.memory_space<vmem>>, vector<1x1x8x32xf32>
    %1 = vector.shape_cast %0 : vector<1x1x8x32xf32> to vector<8x32xf32>
    %c0_3 = arith.constant 0 : index
    %c0_4 = arith.constant 0 : index
    %c0_5 = arith.constant 0 : index
    %c0_6 = arith.constant 0 : index
    %2 = vector.load %arg4[%c0_3, %c0_4, %c0_5, %c0_6] : memref<1x1x8x32xf32, #tpu.memory_space<vmem>>, vector<1x1x8x32xf32>
    %3 = vector.shape_cast %2 : vector<1x1x8x32xf32> to vector<8x32xf32>
    %c0_7 = arith.constant 0 : index
    %c0_8 = arith.constant 0 : index
    %c0_9 = arith.constant 0 : index
    %c0_10 = arith.constant 0 : index
    %4 = vector.load %arg5[%c0_7, %c0_8, %c0_9, %c0_10] : memref<1x1x8x32xf32, #tpu.memory_space<vmem>>, vector<1x1x8x32xf32>
    %5 = vector.shape_cast %4 : vector<1x1x8x32xf32> to vector<8x32xf32>
    %c0_11 = arith.constant 0 : index
    %c0_12 = arith.constant 0 : index
    %c0_13 = arith.constant 0 : index
    %c0_14 = arith.constant 0 : index
    %6 = vector.load %arg6[%c0_11, %c0_12, %c0_13, %c0_14] : memref<1x1x8x8xi8, #tpu.memory_space<vmem>>, vector<1x1x8x8xi8>
    %7 = vector.shape_cast %6 : vector<1x1x8x8xi8> to vector<8x8xi8>
    %cst = arith.constant 0.176776692 : f32
    %8 = vector.broadcast %cst : f32 to vector<8x32xf32>
    %9 = arith.mulf %1, %8 : vector<8x32xf32>
    %cst_15 = arith.constant dense<0.000000e+00> : vector<8x8xf32>
    %10 = tpu.matmul %9, %3, %cst_15 {dimension_numbers = #tpu.dot_dimension_numbers<[1], [1], [0], [0], [0, 0, 1, 0], [], []>, precision = #tpu.contract_precision<fp32>} : vector<8x32xf32>, vector<8x32xf32>, vector<8x8xf32> -> vector<8x8xf32>
    %c0_i8 = arith.constant 0 : i8
    %11 = vector.broadcast %c0_i8 : i8 to vector<8x8xi8>
    %12 = arith.cmpi ne, %7, %11 : vector<8x8xi8>
    %cst_16 = arith.constant 9.99999971E-10 : f32
    %13 = vector.broadcast %cst_16 : f32 to vector<8x8xf32>
    %14 = arith.select %12, %13, %10 : vector<8x8xi1>, vector<8x8xf32>
    %cst_17 = arith.constant dense<0xFF800000> : vector<8xf32>
    %15 = vector.multi_reduction <maximumf>, %14, %cst_17 [1] : vector<8x8xf32> to vector<8xf32>
    %16 = vector.shape_cast %15 : vector<8xf32> to vector<8x1xf32>
    %17 = vector.broadcast %16 : vector<8x1xf32> to vector<8x8xf32>
    %18 = arith.subf %14, %17 : vector<8x8xf32>
    %19 = math.exp %18 : vector<8x8xf32>
    %cst_18 = arith.constant dense<0.000000e+00> : vector<8xf32>
    %20 = vector.multi_reduction <add>, %19, %cst_18 [1] : vector<8x8xf32> to vector<8xf32>
    %21 = vector.shape_cast %20 : vector<8xf32> to vector<8x1xf32>
    %22 = vector.broadcast %21 : vector<8x1xf32> to vector<8x8xf32>
    %23 = arith.divf %19, %22 : vector<8x8xf32>
    %cst_19 = arith.constant dense<0.000000e+00> : vector<8x32xf32>
    %24 = tpu.matmul %23, %5, %cst_19 {dimension_numbers = #tpu.dot_dimension_numbers<[1], [0], [0], [1], [0, 0, 1, 1], [], []>, precision = #tpu.contract_precision<fp32>} : vector<8x8xf32>, vector<8x32xf32>, vector<8x32xf32> -> vector<8x32xf32>
    %c0_20 = arith.constant 0 : index
    %c0_21 = arith.constant 0 : index
    %c0_22 = arith.constant 0 : index
    %c0_23 = arith.constant 0 : index
    %25 = vector.load %arg7[%c0_20, %c0_21, %c0_22, %c0_23] : memref<1x1x8x32xf32, #tpu.memory_space<vmem>>, vector<1x1x8x32xf32>
    %26 = vector.shape_cast %25 : vector<1x1x8x32xf32> to vector<8x32xf32>
    %27 = vector.shape_cast %24 : vector<8x32xf32> to vector<1x1x8x32xf32>
    tpu.vector_store %arg7[%c0_20, %c0_21, %c0_22, %c0_23], %27 {strides = array<i32>} : memref<1x1x8x32xf32, #tpu.memory_space<vmem>>, vector<1x1x8x32xf32>,
    %c0_24 = arith.constant 0 : index
    %c0_25 = arith.constant 0 : index
    %c0_26 = arith.constant 0 : index
    %c0_27 = arith.constant 0 : index
    %28 = vector.load %arg8[%c0_24, %c0_25, %c0_26, %c0_27] : memref<1x1x8x8xf32, #tpu.memory_space<vmem>>, vector<1x1x8x8xf32>
    %29 = vector.shape_cast %28 : vector<1x1x8x8xf32> to vector<8x8xf32>
    %30 = vector.shape_cast %23 : vector<8x8xf32> to vector<1x1x8x8xf32>
    tpu.vector_store %arg8[%c0_24, %c0_25, %c0_26, %c0_27], %30 {strides = array<i32>} : memref<1x1x8x8xf32, #tpu.memory_space<vmem>>, vector<1x1x8x8xf32>,
    return
  }
  func.func @transform_0(%arg0: i32, %arg1: i32, %arg2: i32) -> (i32, i32, i32, i32) {
    %c0_i32 = arith.constant 0 : i32
    %c0_i32_0 = arith.constant 0 : i32
    return %arg0, %arg1, %arg2, %c0_i32 : i32, i32, i32, i32
  }
  func.func @transform_1(%arg0: i32, %arg1: i32, %arg2: i32) -> (i32, i32, i32, i32) {
    %c0_i32 = arith.constant 0 : i32
    %c0_i32_0 = arith.constant 0 : i32
    %c0_i32_1 = arith.constant 0 : i32
    return %arg0, %arg1, %c0_i32, %c0_i32_0 : i32, i32, i32, i32
  }
  func.func @transform_2(%arg0: i32, %arg1: i32, %arg2: i32) -> (i32, i32, i32, i32) {
    %c0_i32 = arith.constant 0 : i32
    %c0_i32_0 = arith.constant 0 : i32
    %c0_i32_1 = arith.constant 0 : i32
    return %arg0, %arg1, %c0_i32, %c0_i32_0 : i32, i32, i32, i32
  }
  func.func @transform_3(%arg0: i32, %arg1: i32, %arg2: i32) -> (i32, i32, i32, i32) {
    %c0_i32 = arith.constant 0 : i32
    %c0_i32_0 = arith.constant 0 : i32
    return %arg0, %arg1, %arg2, %c0_i32 : i32, i32, i32, i32
  }
  func.func @transform_4(%arg0: i32, %arg1: i32, %arg2: i32) -> (i32, i32, i32, i32) {
    %c0_i32 = arith.constant 0 : i32
    %c0_i32_0 = arith.constant 0 : i32
    return %arg0, %arg1, %arg2, %c0_i32 : i32, i32, i32, i32
  }
  func.func @transform_5(%arg0: i32, %arg1: i32, %arg2: i32) -> (i32, i32, i32, i32) {
    %c0_i32 = arith.constant 0 : i32
    %c0_i32_0 = arith.constant 0 : i32
    return %arg0, %arg1, %arg2, %c0_i32 : i32, i32, i32, i32
  }
}

</mosaic_0001>

<llo_original>
// kernel: tpu_custom_call.1
$region0: #{tpu_custom_call.1}
  #allocation0 [shape = 'u32[]', space=smem, size = 0x4, offset = 0x4, fixed_abs, tag = 'smem constant byte address 0x4 - core index']
  #allocation1 [shape = 'u32[144,128]{1,0:T(1,128)}', space=vmem, size = 0x12000, scoped, tag = 'internal scratch']
  %s0 = inlined_call_operand.hbm [shape: f32[2,2,8,32], index: 0, kind: input, shape index: {}]
  %s1 = inlined_call_operand.hbm [shape: f32[2,2,8,32], index: 1, kind: input, shape index: {}]
  %s2 = inlined_call_operand.hbm [shape: f32[2,2,8,32], index: 2, kind: input, shape index: {}]
  %s3 = inlined_call_operand.vmem [shape: s8[2,2,8,8], index: 3, kind: input, shape index: {}]
  %s4 = inlined_call_operand.hbm [shape: f32[2,2,8,32], index: 4, kind: output, shape index: {0}]
  %s5 = inlined_call_operand.hbm [shape: f32[2,2,8,8], index: 5, kind: output, shape index: {1}]
  %6 = xla_tuple %s4, %s5
  %s7 = sld [smem:[#allocation0]]
  $region69: #{tpu_custom_call.1} parent=0
    _
  %s9 = ssub.s32 1, %s7
  %s10 = scalar_select 0, %s9, %s7
  $region1: #{tpu_custom_call.1} parent=0
    #allocation2 [shape = 'u8[8192]{0}', space=vmem, size = 0x2000, scoped, tag = 'input window, operand 0']
    #allocation3 [shape = 's32[2]{0}', space=sflag, size = 0x8, scoped, tag = 'scoped memory for tpu_custom_call.1']
    #allocation4 [shape = 's32[2]{0}', space=sflag, size = 0x8, scoped, tag = 'scoped memory for tpu_custom_call.1']
    #allocation5 [shape = 'u8[8192]{0}', space=vmem, size = 0x2000, scoped, tag = 'input window, operand 1']
    #allocation6 [shape = 's32[2]{0}', space=sflag, size = 0x8, scoped, tag = 'scoped memory for tpu_custom_call.1']
    #allocation7 [shape = 'u8[8192]{0}', space=vmem, size = 0x2000, scoped, tag = 'input window, operand 2']
    #allocation8 [shape = 'u8[8192]{0}', space=vmem, size = 0x2000, scoped, tag = 'output window, operand 0']
    #allocation9 [shape = 'u8[8192]{0}', space=vmem, size = 0x2000, scoped, tag = 'output window, operand 1']
    #allocation10 [shape = 's32[2]{0}', space=sflag, size = 0x8, scoped, tag = 'scoped memory for tpu_custom_call.1']
    %11 = vsyncpa [#allocation3], 0
    %s12 = scalar_lea.sflag [#allocation3], 1
    %13 = vsyncpa %s12, 0
    %14 = vsyncpa [#allocation6], 0
    %s15 = scalar_lea.sflag [#allocation6], 1
    %16 = vsyncpa %s15, 0
    %17 = vsyncpa [#allocation4], 0
    %s18 = scalar_lea.sflag [#allocation4], 1
    %19 = vsyncpa %s18, 0
    %20 = vsyncpa [#allocation10], 0
    %s21 = scalar_lea.sflag [#allocation10], 1
    %22 = vsyncpa %s21, 0
    loop: start=0, step=1, limit=6
    $region2: #{tpu_custom_call.1} parent=1 // loop_pre_header
      _
    $region3: #{tpu_custom_call.1} parent=1 // loop_header
      %s24 = sphi 0, %s28
      %p25 = scmp.ge.s32.totalorder %s24, 6
      %s31 = sphi 0, %s50
      %s32 = sphi 0, %s46
      %s33 = sphi 0, %s42
      %s34 = sphi 0, %s31
      %s35 = sphi 0, %s32
      %s36 = sphi 0, %s33
      %s37 = sphi 0, %s34
      %s38 = sphi 0, %s35
      %s39 = sphi 0, %s36
      %s57 = sphi 0, %s59
      %s60 = sphi 0, %s57
      %s61 = sphi 0, %s60
      %s77 = sphi 0, %s61
      %s85 = sphi 0, %s87
      %s88 = sphi 0, %s85
      %s89 = sphi 0, %s88
      %s105 = sphi 0, %s89
      %s113 = sphi 0, %s115
      %s116 = sphi 0, %s113
      %s117 = sphi 0, %s116
      %s133 = sphi 0, %s117
      %s143 = sphi 0, %s145
      %s146 = sphi 0, %s143
      %s147 = sphi 0, %s146
      %s163 = sphi 0, %s147
      %s173 = sphi 0, %s175
      %s176 = sphi 0, %s173
      %s177 = sphi 0, %s176
      %s193 = sphi 0, %s177
      %s203 = sphi 0, %s205
      %s206 = sphi 0, %s203
      %s207 = sphi 0, %s206
      %s223 = sphi 0, %s207
    $region4: #{tpu_custom_call.1} parent=1 // loop_header_branch
      %27 = sbr.rel (%p25) target = $region8
    $region5: #{tpu_custom_call.1} parent=1 // loop_body
      %s29 = ssub.s32 %s24, 1
      %s30 = ssub.s32 %s24, 2
      %s40 = sadd.s32 1, %s33
      %p41 = scmp.ge.s32.totalorder %s40, 1
      %s42 = scalar_select %p41, 0, %s40
      %s43 = sadd.s32 1, %s32
      %s44 = scalar_select %p41, %s43, %s32
      %p45 = scmp.ge.s32.totalorder %s44, 2
      %s46 = scalar_select %p45, 0, %s44
      %s47 = sadd.s32 1, %s31
      %s48 = scalar_select %p45, %s47, %s31
      %p49 = scmp.ge.s32.totalorder %s48, 2
      %s50 = scalar_select %p49, 0, %s48
      %s51 = ssub.s32 %s31, %s50
      %s52 = ssub.s32 %s32, %s46
      %s53 = sor.u32 %s51, %s52
      %s54 = ssub.s32 %s33, %s42
      %s55 = sor.u32 %s53, %s54
      %p56 = scmp.eq.s32.totalorder %s55, 0
      %s58 = sadd.s32 %s57, 1
      %s59 = scalar_select %p56, %s57, %s58
      %p62 = pneg %p56
      %p63 = scmp.eq.s32.totalorder %s24, 3
      %p64 = por %p62, %p63
      %p65 = scmp.ne.s32.totalorder %s57, %s60
      %p66 = scmp.eq.s32.totalorder %s24, 0
      %p67 = por %p65, %p66
      %p68 = scmp.ne.s32.totalorder %s57, %s60
      %p69 = scmp.eq.s32.totalorder %s29, 3
      %p70 = por %p68, %p69
      %p71 = scmp.ne.s32.totalorder %s60, %s61
      %p72 = scmp.eq.s32.totalorder %s29, 0
      %p73 = por %p71, %p72
      %p74 = scmp.ne.s32.totalorder %s60, %s61
      %p75 = scmp.eq.s32.totalorder %s30, 3
      %p76 = por %p74, %p75
      %p78 = scmp.ne.s32.totalorder %s61, %s77
      %p79 = scmp.eq.s32.totalorder %s30, 0
      %p80 = por %p78, %p79
      %s81 = ssub.s32 %s31, %s50
      %s82 = ssub.s32 %s32, %s46
      %s83 = sor.u32 %s81, %s82
      %p84 = scmp.eq.s32.totalorder %s83, 0
      %s86 = sadd.s32 %s85, 1
      %s87 = scalar_select %p84, %s85, %s86
      %p90 = pneg %p84
      %p91 = scmp.eq.s32.totalorder %s24, 3
      %p92 = por %p90, %p91
      %p93 = scmp.ne.s32.totalorder %s85, %s88
      %p94 = scmp.eq.s32.totalorder %s24, 0
      %p95 = por %p93, %p94
      %p96 = scmp.ne.s32.totalorder %s85, %s88
      %p97 = scmp.eq.s32.totalorder %s29, 3
      %p98 = por %p96, %p97
      %p99 = scmp.ne.s32.totalorder %s88, %s89
      %p100 = scmp.eq.s32.totalorder %s29, 0
      %p101 = por %p99, %p100
      %p102 = scmp.ne.s32.totalorder %s88, %s89
      %p103 = scmp.eq.s32.totalorder %s30, 3
      %p104 = por %p102, %p103
      %p106 = scmp.ne.s32.totalorder %s89, %s105
      %p107 = scmp.eq.s32.totalorder %s30, 0
      %p108 = por %p106, %p107
      %s109 = ssub.s32 %s31, %s50
      %s110 = ssub.s32 %s32, %s46
      %s111 = sor.u32 %s109, %s110
      %p112 = scmp.eq.s32.totalorder %s111, 0
      %s114 = sadd.s32 %s113, 1
      %s115 = scalar_select %p112, %s113, %s114
      %p118 = pneg %p112
      %p119 = scmp.eq.s32.totalorder %s24, 3
      %p120 = por %p118, %p119
      %p121 = scmp.ne.s32.totalorder %s113, %s116
      %p122 = scmp.eq.s32.totalorder %s24, 0
      %p123 = por %p121, %p122
      %p124 = scmp.ne.s32.totalorder %s113, %s116
      %p125 = scmp.eq.s32.totalorder %s29, 3
      %p126 = por %p124, %p125
      %p127 = scmp.ne.s32.totalorder %s116, %s117
      %p128 = scmp.eq.s32.totalorder %s29, 0
      %p129 = por %p127, %p128
      %p130 = scmp.ne.s32.totalorder %s116, %s117
      %p131 = scmp.eq.s32.totalorder %s30, 3
      %p132 = por %p130, %p131
      %p134 = scmp.ne.s32.totalorder %s117, %s133
      %p135 = scmp.eq.s32.totalorder %s30, 0
      %p136 = por %p134, %p135
      %s137 = ssub.s32 %s31, %s50
      %s138 = ssub.s32 %s32, %s46
      %s139 = sor.u32 %s137, %s138
      %s140 = ssub.s32 %s33, %s42
      %s141 = sor.u32 %s139, %s140
      %p142 = scmp.eq.s32.totalorder %s141, 0
      %s144 = sadd.s32 %s143, 1
      %s145 = scalar_select %p142, %s143, %s144
      %p148 = pneg %p142
      %p149 = scmp.eq.s32.totalorder %s24, 3
      %p150 = por %p148, %p149
      %p151 = scmp.ne.s32.totalorder %s143, %s146
      %p152 = scmp.eq.s32.totalorder %s24, 0
      %p153 = por %p151, %p152
      %p154 = scmp.ne.s32.totalorder %s143, %s146
      %p155 = scmp.eq.s32.totalorder %s29, 3
      %p156 = por %p154, %p155
      %p157 = scmp.ne.s32.totalorder %s146, %s147
      %p158 = scmp.eq.s32.totalorder %s29, 0
      %p159 = por %p157, %p158
      %p160 = scmp.ne.s32.totalorder %s146, %s147
      %p161 = scmp.eq.s32.totalorder %s30, 3
      %p162 = por %p160, %p161
      %p164 = scmp.ne.s32.totalorder %s147, %s163
      %p165 = scmp.eq.s32.totalorder %s30, 0
      %p166 = por %p164, %p165
      %s167 = ssub.s32 %s31, %s50
      %s168 = ssub.s32 %s32, %s46
      %s169 = sor.u32 %s167, %s168
      %s170 = ssub.s32 %s33, %s42
      %s171 = sor.u32 %s169, %s170
      %p172 = scmp.eq.s32.totalorder %s171, 0
      %s174 = sadd.s32 %s173, 1
      %s175 = scalar_select %p172, %s173, %s174
      %p178 = pneg %p172
      %p179 = scmp.eq.s32.totalorder %s24, 3
      %p180 = por %p178, %p179
      %p181 = scmp.ne.s32.totalorder %s173, %s176
      %p182 = scmp.eq.s32.totalorder %s24, 0
      %p183 = por %p181, %p182
      %p184 = scmp.ne.s32.totalorder %s173, %s176
      %p185 = scmp.eq.s32.totalorder %s29, 3
      %p186 = por %p184, %p185
      %p187 = scmp.ne.s32.totalorder %s176, %s177
      %p188 = scmp.eq.s32.totalorder %s29, 0
      %p189 = por %p187, %p188
      %p190 = scmp.ne.s32.totalorder %s176, %s177
      %p191 = scmp.eq.s32.totalorder %s30, 3
      %p192 = por %p190, %p191
      %p194 = scmp.ne.s32.totalorder %s177, %s193
      %p195 = scmp.eq.s32.totalorder %s30, 0
      %p196 = por %p194, %p195
      %s197 = ssub.s32 %s31, %s50
      %s198 = ssub.s32 %s32, %s46
      %s199 = sor.u32 %s197, %s198
      %s200 = ssub.s32 %s33, %s42
      %s201 = sor.u32 %s199, %s200
      %p202 = scmp.eq.s32.totalorder %s201, 0
      %s204 = sadd.s32 %s203, 1
      %s205 = scalar_select %p202, %s203, %s204
      %p208 = pneg %p202
      %p209 = scmp.eq.s32.totalorder %s24, 3
      %p210 = por %p208, %p209
      %p211 = scmp.ne.s32.totalorder %s203, %s206
      %p212 = scmp.eq.s32.totalorder %s24, 0
      %p213 = por %p211, %p212
      %p214 = scmp.ne.s32.totalorder %s203, %s206
      %p215 = scmp.eq.s32.totalorder %s29, 3
      %p216 = por %p214, %p215
      %p217 = scmp.ne.s32.totalorder %s206, %s207
      %p218 = scmp.eq.s32.totalorder %s29, 0
      %p219 = por %p217, %p218
      %p220 = scmp.ne.s32.totalorder %s206, %s207
      %p221 = scmp.eq.s32.totalorder %s30, 3
      %p222 = por %p220, %p221
      %p224 = scmp.ne.s32.totalorder %s207, %s223
      %p225 = scmp.eq.s32.totalorder %s30, 0
      %p226 = por %p224, %p225
      %p227 = scmp.le.s32.totalorder 1, %s24
      %p228 = scmp.lt.s32.totalorder %s24, 5
      %p229 = pnand %p227, %p228
      %p230 = pneg %p229
      // Predicated region
      $region9: #{tpu_custom_call.1} parent=5 // pred_check
        _
      $region10: #{tpu_custom_call.1} parent=5 // pred_check_branch
        %232 = sbr.rel (%p229) target = $region12
      $region11: #{tpu_custom_call.1} parent=5 // pred_region
        %s233 = ssub.s32 %s24, 1
      $region12: #{tpu_custom_call.1} parent=5 // pred_fallthru
        _
      %p234 = scmp.lt.s32.totalorder %s24, 4
      // Predicated region
      $region13: #{tpu_custom_call.1} parent=5 // pred_check
        %p235 = pneg %p234
      $region14: #{tpu_custom_call.1} parent=5 // pred_check_branch
        %237 = sbr.rel (%p235) target = $region16
      $region15: #{tpu_custom_call.1} parent=5 // pred_region
        // Predicated region
        $region17: #{tpu_custom_call.1} parent=15 // pred_check
          %p238 = pneg %p67
        $region18: #{tpu_custom_call.1} parent=15 // pred_check_branch
          %240 = sbr.rel (%p238) target = $region20
        $region19: #{tpu_custom_call.1} parent=15 // pred_region
          %s241 = sand.u32 %s57, 1
          %s242 = scalar_lea.sflag [#allocation3], %s241
          %s243 = sand.u32 %s57, 1
          %s244 = smul.addr %s243, 8
          %s245 = scalar_lea.vmem [#allocation2], %s244
          %s247 = ssub.s32 128, 128
          %248 = vsyncadd %s242, %s247
          %s249 = sadd.s32 %s33, %s32
          %s250 = smul.addr %s31, 2
          %s251 = sadd.s32 %s249, %s250
          %s252 = smul.addr %s251, 128
          %s253 = scalar_lea.hbm %s0, %s252
          %s255 = sshll.u32 %s245, 4
          %s256 = int_to_ptr.vmem [resolvable:$true] %s255
          %258 = dma.hbm_to_vmem [thread:$0]  %s253, 128, %s256, %s242
        $region20: #{tpu_custom_call.1} parent=15 // pred_fallthru
          _
        // Predicated region
        $region21: #{tpu_custom_call.1} parent=15 // pred_check
          %p259 = pneg %p95
        $region22: #{tpu_custom_call.1} parent=15 // pred_check_branch
          %261 = sbr.rel (%p259) target = $region24
        $region23: #{tpu_custom_call.1} parent=15 // pred_region
          %s262 = sand.u32 %s24, 1
          %s263 = scalar_lea.sflag [#allocation6], %s262
          %s264 = sand.u32 %s85, 1
          %s265 = smul.addr %s264, 8
          %s266 = scalar_lea.vmem [#allocation5], %s265
          %s268 = ssub.s32 128, 128
          %269 = vsyncadd %s263, %s268
          %s270 = smul.addr %s31, 2
          %s271 = sadd.s32 %s32, %s270
          %s272 = smul.addr %s271, 128
          %s273 = scalar_lea.hbm %s1, %s272
          %s275 = sshll.u32 %s266, 4
          %s276 = int_to_ptr.vmem [resolvable:$true] %s275
          %278 = dma.hbm_to_vmem [thread:$0]  %s273, 128, %s276, %s263
        $region24: #{tpu_custom_call.1} parent=15 // pred_fallthru
          _
        // Predicated region
        $region25: #{tpu_custom_call.1} parent=15 // pred_check
          %p279 = pneg %p123
        $region26: #{tpu_custom_call.1} parent=15 // pred_check_branch
          %281 = sbr.rel (%p279) target = $region28
        $region27: #{tpu_custom_call.1} parent=15 // pred_region
          %s282 = sand.u32 %s24, 1
          %s283 = scalar_lea.sflag [#allocation6], %s282
          %s284 = sand.u32 %s113, 1
          %s285 = smul.addr %s284, 8
          %s286 = scalar_lea.vmem [#allocation7], %s285
          %s288 = ssub.s32 128, 128
          %289 = vsyncadd %s283, %s288
          %s290 = smul.addr %s31, 2
          %s291 = sadd.s32 %s32, %s290
          %s292 = smul.addr %s291, 128
          %s293 = scalar_lea.hbm %s2, %s292
          %s295 = sshll.u32 %s286, 4
          %s296 = int_to_ptr.vmem [resolvable:$true] %s295
          %298 = dma.hbm_to_vmem [thread:$0]  %s293, 128, %s296, %s283
        $region28: #{tpu_custom_call.1} parent=15 // pred_fallthru
          _
        // Predicated region
        $region29: #{tpu_custom_call.1} parent=15 // pred_check
          %p299 = pneg %p153
        $region30: #{tpu_custom_call.1} parent=15 // pred_check_branch
          %301 = sbr.rel (%p299) target = $region32
        $region31: #{tpu_custom_call.1} parent=15 // pred_region
          %p302 = scmp.lt.s32.totalorder %s31, 1
          %s303 = scalar_select %p302, %s31, 1
          %p304 = scmp.lt.s32.totalorder %s32, 1
          %s305 = scalar_select %p304, %s32, 1
          %p306 = scmp.lt.s32.totalorder %s33, 0
          %s307 = scalar_select %p306, %s33, 0
          %s308 = sadd.s32 %s307, %s305
          %s309 = smul.addr %s303, 2
          %s310 = sadd.s32 %s308, %s309
          %s311 = smul.addr %s310, 2
          %s312 = scalar_lea.vmem %s3, %s311
        $region32: #{tpu_custom_call.1} parent=15 // pred_fallthru
          _
      $region16: #{tpu_custom_call.1} parent=5 // pred_fallthru
        _
      %p313 = scmp.le.s32.totalorder 1, %s24
      %p314 = scmp.lt.s32.totalorder %s24, 5
      %p315 = pnand %p313, %p314
      %p316 = pneg %p315
      // Predicated region
      $region33: #{tpu_custom_call.1} parent=5 // pred_check
        _
      $region34: #{tpu_custom_call.1} parent=5 // pred_check_branch
        %318 = sbr.rel (%p315) target = $region36
      $region35: #{tpu_custom_call.1} parent=5 // pred_region
        %s319 = ssub.s32 %s24, 1
        %s320 = sand.u32 %s60, 1
        %s321 = scalar_lea.sflag [#allocation3], %s320
        %s322 = sand.u32 %s60, 1
        %s323 = smul.addr %s322, 8
        %s324 = scalar_lea.vmem [#allocation2], %s323
        // Predicated region
        $region37: #{tpu_custom_call.1} parent=35 // pred_check
          %p325 = pneg %p73
        $region38: #{tpu_custom_call.1} parent=35 // pred_check_branch
          %327 = sbr.rel (%p325) target = $region40
        $region39: #{tpu_custom_call.1} parent=35 // pred_region
          %328 = dma.done %s321, 128
        $region40: #{tpu_custom_call.1} parent=35 // pred_fallthru
          _
        %s329 = sand.u32 %s29, 1
        %s330 = scalar_lea.sflag [#allocation6], %s329
        %s331 = sand.u32 %s88, 1
        %s332 = smul.addr %s331, 8
        %s333 = scalar_lea.vmem [#allocation5], %s332
        // Predicated region
        $region41: #{tpu_custom_call.1} parent=35 // pred_check
          %p334 = pneg %p101
        $region42: #{tpu_custom_call.1} parent=35 // pred_check_branch
          %336 = sbr.rel (%p334) target = $region44
        $region43: #{tpu_custom_call.1} parent=35 // pred_region
          %337 = dma.done %s330, 128
        $region44: #{tpu_custom_call.1} parent=35 // pred_fallthru
          _
        %s338 = sand.u32 %s29, 1
        %s339 = scalar_lea.sflag [#allocation6], %s338
        %s340 = sand.u32 %s116, 1
        %s341 = smul.addr %s340, 8
        %s342 = scalar_lea.vmem [#allocation7], %s341
        // Predicated region
        $region45: #{tpu_custom_call.1} parent=35 // pred_check
          %p343 = pneg %p129
        $region46: #{tpu_custom_call.1} parent=35 // pred_check_branch
          %345 = sbr.rel (%p343) target = $region48
        $region47: #{tpu_custom_call.1} parent=35 // pred_region
          %346 = dma.done %s339, 128
        $region48: #{tpu_custom_call.1} parent=35 // pred_fallthru
          _
        %s347 = sand.u32 %s60, 1
        %s348 = scalar_lea.sflag [#allocation3], %s347
        %s349 = sand.u32 %s60, 1
        %s350 = smul.addr %s349, 8
        %s351 = scalar_lea.vmem [#allocation2], %s350
        %p352 = pneg %p73
        %p353 = pneg %p70
        %s354 = sand.u32 %s29, 1
        %s355 = scalar_lea.sflag [#allocation6], %s354
        %s356 = sand.u32 %s88, 1
        %s357 = smul.addr %s356, 8
        %s358 = scalar_lea.vmem [#allocation5], %s357
        %p359 = pneg %p101
        %p360 = pneg %p98
        %s361 = sand.u32 %s29, 1
        %s362 = scalar_lea.sflag [#allocation6], %s361
        %s363 = sand.u32 %s116, 1
        %s364 = smul.addr %s363, 8
        %s365 = scalar_lea.vmem [#allocation7], %s364
        %p366 = pneg %p129
        %p367 = pneg %p126
        %p368 = scmp.lt.s32.totalorder %s34, 1
        %s369 = scalar_select %p368, %s34, 1
        %p370 = scmp.lt.s32.totalorder %s35, 1
        %s371 = scalar_select %p370, %s35, 1
        %p372 = scmp.lt.s32.totalorder %s36, 0
        %s373 = scalar_select %p372, %s36, 0
        %s374 = sadd.s32 %s373, %s371
        %s375 = smul.addr %s369, 2
        %s376 = sadd.s32 %s374, %s375
        %s377 = smul.addr %s376, 2
        %s378 = scalar_lea.vmem %s3, %s377
        %p379 = pneg %p159
        %p380 = pneg %p156
        %p381 = pneg %p189
        %p382 = pneg %p186
        %s383 = sand.u32 %s176, 1
        %s384 = scalar_lea.sflag [#allocation4], %s383
        %s385 = sand.u32 %s176, 1
        %s386 = smul.addr %s385, 8
        %s387 = scalar_lea.vmem [#allocation8], %s386
        %p388 = pneg %p219
        %p389 = pneg %p216
        %s390 = sand.u32 %s206, 1
        %s391 = scalar_lea.sflag [#allocation10], %s390
        %s392 = sand.u32 %s206, 1
        %s393 = smul.addr %s392, 8
        %s394 = scalar_lea.vmem [#allocation9], %s393
        %p395 = scmp.lt.s32.totalorder %s34, 1
        %s396 = scalar_select %p395, %s34, 1
        %p397 = scmp.lt.s32.totalorder %s35, 1
        %s398 = scalar_select %p397, %s35, 1
        %p399 = scmp.lt.s32.totalorder %s36, 0
        %s400 = scalar_select %p399, %s36, 0
        %s401 = sadd.s32 %s400, %s398
        %s402 = smul.addr %s396, 2
        %s403 = sadd.s32 %s401, %s402
        %s404 = smul.addr %s403, 2
        %s405 = scalar_lea.vmem %s3, %s404
        %v408 = vld [vmem:[%s324] sm:$0xff]
        %v409 = vld [vmem:[%s333] sm:$0xff]
        %v410 = vld [vmem:[%s342] sm:$0xff]
        %v411 = vld [vmem:[%s405] sm:$0x3]
        %v412 = vmul.f32 %v408, 0.17677669
        %vm413 = vcmask 261120
        %v415 = vsel %vm413, %v412, 0
        %v418 = vsel %vm413, %v409, 0
        %420 = vmatprep.subr.mxu0 0.0
        %v421 = vand.u32 %v418, 4294901760
        %422 = vmatpush1.xpose.msra.mxu0 %v421
        %423 = vmatprep.subr.mxu0 0.0
        %424 = vmatpush1.xpose.msra.mxu0 0.0
        %425 = vmatprep.subr.mxu0 0.0
        %426 = vmatpush1.xpose.msra.mxu0 0.0
        %427 = vmatprep.subr.mxu0 0.0
        %428 = vmatpush1.xpose.msra.mxu0 0.0
        %429 = vmatprep.subr.mxu0 0.0
        %430 = vmatpush1.xpose.msra.mxu0 0.0
        %431 = vmatprep.subr.mxu0 0.0
        %432 = vmatpush1.xpose.msra.mxu0 0.0
        %433 = vmatprep.subr.mxu0 0.0
        %434 = vmatpush1.xpose.msra.mxu0 0.0
        %435 = vmatprep.subr.mxu0 0.0
        %436 = vmatpush1.xpose.msra.mxu0 0.0
        %437 = vmatprep.subr.mxu0 0.0
        %438 = vmatpush1.xpose.msra.mxu0 0.0
        %439 = vmatprep.subr.mxu0 0.0
        %440 = vmatpush1.xpose.msra.mxu0 0.0
        %441 = vmatprep.subr.mxu0 0.0
        %442 = vmatpush1.xpose.msra.mxu0 0.0
        %443 = vmatprep.subr.mxu0 0.0
        %444 = vmatpush1.xpose.msra.mxu0 0.0
        %445 = vmatprep.subr.mxu0 0.0
        %446 = vmatpush1.xpose.msra.mxu0 0.0
        %447 = vmatprep.subr.mxu0 0.0
        %448 = vmatpush1.xpose.msra.mxu0 0.0
        %449 = vmatprep.subr.mxu0 0.0
        %450 = vmatpush1.xpose.msra.mxu0 0.0
        %451 = vmatprep.subr.mxu0 0.0
        %452 = vmatpush1.xpose.msra.mxu0 0.0
        %453 = vmatprep.subr.mxu0 0.0
        %454 = vmatpush1.xpose.msra.mxu0 0.0
        %455 = vmatprep.subr.mxu0 0.0
        %456 = vmatpush1.xpose.msra.mxu0 0.0
        %457 = vmatprep.subr.mxu0 0.0
        %458 = vmatpush1.xpose.msra.mxu0 0.0
        %459 = vmatprep.subr.mxu0 0.0
        %460 = vmatpush1.xpose.msra.mxu0 0.0
        %461 = vmatprep.subr.mxu0 0.0
        %462 = vmatpush1.xpose.msra.mxu0 0.0
        %463 = vmatprep.subr.mxu0 0.0
        %464 = vmatpush1.xpose.msra.mxu0 0.0
        %465 = vmatprep.subr.mxu0 0.0
        %466 = vmatpush1.xpose.msra.mxu0 0.0
        %467 = vmatprep.subr.mxu0 0.0
        %468 = vmatpush1.xpose.msra.mxu0 0.0
        %469 = vmatprep.subr.mxu0 0.0
        %470 = vmatpush1.xpose.msra.mxu0 0.0
        %471 = vmatprep.subr.mxu0 0.0
        %472 = vmatpush1.xpose.msra.mxu0 0.0
        %473 = vmatprep.subr.mxu0 0.0
        %474 = vmatpush1.xpose.msra.mxu0 0.0
        %475 = vmatprep.subr.mxu0 0.0
        %476 = vmatpush1.xpose.msra.mxu0 0.0
        %477 = vmatprep.subr.mxu0 0.0
        %478 = vmatpush1.xpose.msra.mxu0 0.0
        %479 = vmatprep.subr.mxu0 0.0
        %480 = vmatpush1.xpose.msra.mxu0 0.0
        %481 = vmatprep.subr.mxu0 0.0
        %482 = vmatpush1.xpose.msra.mxu0 0.0
        %483 = vmatprep.subr.mxu0 0.0
        %484 = vmatpush1.xpose.msra.mxu0 0.0
        %485 = vmatprep.mubr.f32.mxu0 0.0
        %v486 = vand.u32 %v415, 4294901760
        %v487 = vsub.f32 %v415, %v486
        %v488 = vand.u32 %v487, 4294901760
        %v489 = vsub.f32 %v487, %v488
        %v490 = vand.u32 %v489, 4294901760
        %491 = vmatmul.mubr.f32.gmra.mrb[0].mxu0 %v490
        %v492 = vpop.f32.mrb[0].mxu0
        %v493 = vadd.f32 0.0, %v492
        %v494 = vpop.f32.mrb[0].mxu0
        %495 = vdwg.mxu0
        %496 = vmatprep.subr.mxu0 0.0
        %v497 = vand.u32 %v418, 4294901760
        %v498 = vsub.f32 %v418, %v497
        %v499 = vand.u32 %v498, 4294901760
        %v500 = vsub.f32 %v498, %v499
        %v501 = vand.u32 %v500, 4294901760
        %502 = vmatpush1.xpose.msra.mxu0 %v501
        %503 = vmatprep.subr.mxu0 0.0
        %504 = vmatpush1.xpose.msra.mxu0 0.0
        %505 = vmatprep.subr.mxu0 0.0
        %506 = vmatpush1.xpose.msra.mxu0 0.0
        %507 = vmatprep.subr.mxu0 0.0
        %508 = vmatpush1.xpose.msra.mxu0 0.0
        %509 = vmatprep.subr.mxu0 0.0
        %510 = vmatpush1.xpose.msra.mxu0 0.0
        %511 = vmatprep.subr.mxu0 0.0
        %512 = vmatpush1.xpose.msra.mxu0 0.0
        %513 = vmatprep.subr.mxu0 0.0
        %514 = vmatpush1.xpose.msra.mxu0 0.0
        %515 = vmatprep.subr.mxu0 0.0
        %516 = vmatpush1.xpose.msra.mxu0 0.0
        %517 = vmatprep.subr.mxu0 0.0
        %518 = vmatpush1.xpose.msra.mxu0 0.0
        %519 = vmatprep.subr.mxu0 0.0
        %520 = vmatpush1.xpose.msra.mxu0 0.0
        %521 = vmatprep.subr.mxu0 0.0
        %522 = vmatpush1.xpose.msra.mxu0 0.0
        %523 = vmatprep.subr.mxu0 0.0
        %524 = vmatpush1.xpose.msra.mxu0 0.0
        %525 = vmatprep.subr.mxu0 0.0
        %526 = vmatpush1.xpose.msra.mxu0 0.0
        %527 = vmatprep.subr.mxu0 0.0
        %528 = vmatpush1.xpose.msra.mxu0 0.0
        %529 = vmatprep.subr.mxu0 0.0
        %530 = vmatpush1.xpose.msra.mxu0 0.0
        %531 = vmatprep.subr.mxu0 0.0
        %532 = vmatpush1.xpose.msra.mxu0 0.0
        %533 = vmatprep.subr.mxu0 0.0
        %534 = vmatpush1.xpose.msra.mxu0 0.0
        %535 = vmatprep.subr.mxu0 0.0
        %536 = vmatpush1.xpose.msra.mxu0 0.0
        %537 = vmatprep.subr.mxu0 0.0
        %538 = vmatpush1.xpose.msra.mxu0 0.0
        %539 = vmatprep.subr.mxu0 0.0
        %540 = vmatpush1.xpose.msra.mxu0 0.0
        %541 = vmatprep.subr.mxu0 0.0
        %542 = vmatpush1.xpose.msra.mxu0 0.0
        %543 = vmatprep.subr.mxu0 0.0
        %544 = vmatpush1.xpose.msra.mxu0 0.0
        %545 = vmatprep.subr.mxu0 0.0
        %546 = vmatpush1.xpose.msra.mxu0 0.0
        %547 = vmatprep.subr.mxu0 0.0
        %548 = vmatpush1.xpose.msra.mxu0 0.0
        %549 = vmatprep.subr.mxu0 0.0
        %550 = vmatpush1.xpose.msra.mxu0 0.0
        %551 = vmatprep.subr.mxu0 0.0
        %552 = vmatpush1.xpose.msra.mxu0 0.0
        %553 = vmatprep.subr.mxu0 0.0
        %554 = vmatpush1.xpose.msra.mxu0 0.0
        %555 = vmatprep.subr.mxu0 0.0
        %556 = vmatpush1.xpose.msra.mxu0 0.0
        %557 = vmatprep.subr.mxu0 0.0
        %558 = vmatpush1.xpose.msra.mxu0 0.0
        %559 = vmatprep.subr.mxu0 0.0
        %560 = vmatpush1.xpose.msra.mxu0 0.0
        %561 = vmatprep.subr.mxu0 0.0
        %562 = vmatpush1.xpose.msra.mxu0 0.0
        %563 = vmatprep.subr.mxu0 0.0
        %564 = vmatpush1.xpose.msra.mxu0 0.0
        %565 = vmatprep.mubr.f32.mxu0 0.0
        %v566 = vand.u32 %v415, 4294901760
        %567 = vmatmul.mubr.f32.gmra.mrb[0].mxu0 %v566
        %v568 = vpop.f32.mrb[0].mxu0
        %v569 = vadd.f32 %v493, %v568
        %v570 = vpop.f32.mrb[0].mxu0
        %571 = vdwg.mxu0
        %572 = vmatprep.subr.mxu0 0.0
        %v573 = vand.u32 %v418, 4294901760
        %v574 = vsub.f32 %v418, %v573
        %575 = vmatpush1.xpose.msra.mxu0 %v574
        %576 = vmatprep.subr.mxu0 0.0
        %577 = vmatpush1.xpose.msra.mxu0 0.0
        %578 = vmatprep.subr.mxu0 0.0
        %579 = vmatpush1.xpose.msra.mxu0 0.0
        %580 = vmatprep.subr.mxu0 0.0
        %581 = vmatpush1.xpose.msra.mxu0 0.0
        %582 = vmatprep.subr.mxu0 0.0
        %583 = vmatpush1.xpose.msra.mxu0 0.0
        %584 = vmatprep.subr.mxu0 0.0
        %585 = vmatpush1.xpose.msra.mxu0 0.0
        %586 = vmatprep.subr.mxu0 0.0
        %587 = vmatpush1.xpose.msra.mxu0 0.0
        %588 = vmatprep.subr.mxu0 0.0
        %589 = vmatpush1.xpose.msra.mxu0 0.0
        %590 = vmatprep.subr.mxu0 0.0
        %591 = vmatpush1.xpose.msra.mxu0 0.0
        %592 = vmatprep.subr.mxu0 0.0
        %593 = vmatpush1.xpose.msra.mxu0 0.0
        %594 = vmatprep.subr.mxu0 0.0
        %595 = vmatpush1.xpose.msra.mxu0 0.0
        %596 = vmatprep.subr.mxu0 0.0
        %597 = vmatpush1.xpose.msra.mxu0 0.0
        %598 = vmatprep.subr.mxu0 0.0
        %599 = vmatpush1.xpose.msra.mxu0 0.0
        %600 = vmatprep.subr.mxu0 0.0
        %601 = vmatpush1.xpose.msra.mxu0 0.0
        %602 = vmatprep.subr.mxu0 0.0
        %603 = vmatpush1.xpose.msra.mxu0 0.0
        %604 = vmatprep.subr.mxu0 0.0
        %605 = vmatpush1.xpose.msra.mxu0 0.0
        %606 = vmatprep.subr.mxu0 0.0
        %607 = vmatpush1.xpose.msra.mxu0 0.0
        %608 = vmatprep.subr.mxu0 0.0
        %609 = vmatpush1.xpose.msra.mxu0 0.0
        %610 = vmatprep.subr.mxu0 0.0
        %611 = vmatpush1.xpose.msra.mxu0 0.0
        %612 = vmatprep.subr.mxu0 0.0
        %613 = vmatpush1.xpose.msra.mxu0 0.0
        %614 = vmatprep.subr.mxu0 0.0
        %615 = vmatpush1.xpose.msra.mxu0 0.0
        %616 = vmatprep.subr.mxu0 0.0
        %617 = vmatpush1.xpose.msra.mxu0 0.0
        %618 = vmatprep.subr.mxu0 0.0
        %619 = vmatpush1.xpose.msra.mxu0 0.0
        %620 = vmatprep.subr.mxu0 0.0
        %621 = vmatpush1.xpose.msra.mxu0 0.0
        %622 = vmatprep.subr.mxu0 0.0
        %623 = vmatpush1.xpose.msra.mxu0 0.0
        %624 = vmatprep.subr.mxu0 0.0
        %625 = vmatpush1.xpose.msra.mxu0 0.0
        %626 = vmatprep.subr.mxu0 0.0
        %627 = vmatpush1.xpose.msra.mxu0 0.0
        %628 = vmatprep.subr.mxu0 0.0
        %629 = vmatpush1.xpose.msra.mxu0 0.0
        %630 = vmatprep.subr.mxu0 0.0
        %631 = vmatpush1.xpose.msra.mxu0 0.0
        %632 = vmatprep.subr.mxu0 0.0
        %633 = vmatpush1.xpose.msra.mxu0 0.0
        %634 = vmatprep.subr.mxu0 0.0
        %635 = vmatpush1.xpose.msra.mxu0 0.0
        %636 = vmatprep.subr.mxu0 0.0
        %637 = vmatpush1.xpose.msra.mxu0 0.0
        %638 = vmatprep.mubr.f32.mxu0 0.0
        %v639 = vand.u32 %v415, 4294901760
        %v640 = vsub.f32 %v415, %v639
        %641 = vmatmul.mubr.f32.gmra.mrb[0].mxu0 %v640
        %v642 = vpop.f32.mrb[0].mxu0
        %v643 = vadd.f32 %v569, %v642
        %v644 = vpop.f32.mrb[0].mxu0
        %645 = vdwg.mxu0
        %646 = vmatprep.subr.mxu0 0.0
        %v647 = vand.u32 %v418, 4294901760
        %648 = vmatpush1.xpose.msra.mxu0 %v647
        %649 = vmatprep.subr.mxu0 0.0
        %650 = vmatpush1.xpose.msra.mxu0 0.0
        %651 = vmatprep.subr.mxu0 0.0
        %652 = vmatpush1.xpose.msra.mxu0 0.0
        %653 = vmatprep.subr.mxu0 0.0
        %654 = vmatpush1.xpose.msra.mxu0 0.0
        %655 = vmatprep.subr.mxu0 0.0
        %656 = vmatpush1.xpose.msra.mxu0 0.0
        %657 = vmatprep.subr.mxu0 0.0
        %658 = vmatpush1.xpose.msra.mxu0 0.0
        %659 = vmatprep.subr.mxu0 0.0
        %660 = vmatpush1.xpose.msra.mxu0 0.0
        %661 = vmatprep.subr.mxu0 0.0
        %662 = vmatpush1.xpose.msra.mxu0 0.0
        %663 = vmatprep.subr.mxu0 0.0
        %664 = vmatpush1.xpose.msra.mxu0 0.0
        %665 = vmatprep.subr.mxu0 0.0
        %666 = vmatpush1.xpose.msra.mxu0 0.0
        %667 = vmatprep.subr.mxu0 0.0
        %668 = vmatpush1.xpose.msra.mxu0 0.0
        %669 = vmatprep.subr.mxu0 0.0
        %670 = vmatpush1.xpose.msra.mxu0 0.0
        %671 = vmatprep.subr.mxu0 0.0
        %672 = vmatpush1.xpose.msra.mxu0 0.0
        %673 = vmatprep.subr.mxu0 0.0
        %674 = vmatpush1.xpose.msra.mxu0 0.0
        %675 = vmatprep.subr.mxu0 0.0
        %676 = vmatpush1.xpose.msra.mxu0 0.0
        %677 = vmatprep.subr.mxu0 0.0
        %678 = vmatpush1.xpose.msra.mxu0 0.0
        %679 = vmatprep.subr.mxu0 0.0
        %680 = vmatpush1.xpose.msra.mxu0 0.0
        %681 = vmatprep.subr.mxu0 0.0
        %682 = vmatpush1.xpose.msra.mxu0 0.0
        %683 = vmatprep.subr.mxu0 0.0
        %684 = vmatpush1.xpose.msra.mxu0 0.0
        %685 = vmatprep.subr.mxu0 0.0
        %686 = vmatpush1.xpose.msra.mxu0 0.0
        %687 = vmatprep.subr.mxu0 0.0
        %688 = vmatpush1.xpose.msra.mxu0 0.0
        %689 = vmatprep.subr.mxu0 0.0
        %690 = vmatpush1.xpose.msra.mxu0 0.0
        %691 = vmatprep.subr.mxu0 0.0
        %692 = vmatpush1.xpose.msra.mxu0 0.0
        %693 = vmatprep.subr.mxu0 0.0
        %694 = vmatpush1.xpose.msra.mxu0 0.0
        %695 = vmatprep.subr.mxu0 0.0
        %696 = vmatpush1.xpose.msra.mxu0 0.0
        %697 = vmatprep.subr.mxu0 0.0
        %698 = vmatpush1.xpose.msra.mxu0 0.0
        %699 = vmatprep.subr.mxu0 0.0
        %700 = vmatpush1.xpose.msra.mxu0 0.0
        %701 = vmatprep.subr.mxu0 0.0
        %702 = vmatpush1.xpose.msra.mxu0 0.0
        %703 = vmatprep.subr.mxu0 0.0
        %704 = vmatpush1.xpose.msra.mxu0 0.0
        %705 = vmatprep.subr.mxu0 0.0
        %706 = vmatpush1.xpose.msra.mxu0 0.0
        %707 = vmatprep.subr.mxu0 0.0
        %708 = vmatpush1.xpose.msra.mxu0 0.0
        %709 = vmatprep.subr.mxu0 0.0
        %710 = vmatpush1.xpose.msra.mxu0 0.0
        %711 = vmatprep.mubr.f32.mxu0 0.0
        %v712 = vand.u32 %v415, 4294901760
        %v713 = vsub.f32 %v415, %v712
        %v714 = vand.u32 %v713, 4294901760
        %715 = vmatmul.mubr.f32.gmra.mrb[0].mxu0 %v714
        %v716 = vpop.f32.mrb[0].mxu0
        %v717 = vadd.f32 %v643, %v716
        %v718 = vpop.f32.mrb[0].mxu0
        %719 = vdwg.mxu0
        %720 = vmatprep.subr.mxu0 0.0
        %v721 = vand.u32 %v418, 4294901760
        %v722 = vsub.f32 %v418, %v721
        %v723 = vand.u32 %v722, 4294901760
        %724 = vmatpush1.xpose.msra.mxu0 %v723
        %725 = vmatprep.subr.mxu0 0.0
        %726 = vmatpush1.xpose.msra.mxu0 0.0
        %727 = vmatprep.subr.mxu0 0.0
        %728 = vmatpush1.xpose.msra.mxu0 0.0
        %729 = vmatprep.subr.mxu0 0.0
        %730 = vmatpush1.xpose.msra.mxu0 0.0
        %731 = vmatprep.subr.mxu0 0.0
        %732 = vmatpush1.xpose.msra.mxu0 0.0
        %733 = vmatprep.subr.mxu0 0.0
        %734 = vmatpush1.xpose.msra.mxu0 0.0
        %735 = vmatprep.subr.mxu0 0.0
        %736 = vmatpush1.xpose.msra.mxu0 0.0
        %737 = vmatprep.subr.mxu0 0.0
        %738 = vmatpush1.xpose.msra.mxu0 0.0
        %739 = vmatprep.subr.mxu0 0.0
        %740 = vmatpush1.xpose.msra.mxu0 0.0
        %741 = vmatprep.subr.mxu0 0.0
        %742 = vmatpush1.xpose.msra.mxu0 0.0
        %743 = vmatprep.subr.mxu0 0.0
        %744 = vmatpush1.xpose.msra.mxu0 0.0
        %745 = vmatprep.subr.mxu0 0.0
        %746 = vmatpush1.xpose.msra.mxu0 0.0
        %747 = vmatprep.subr.mxu0 0.0
        %748 = vmatpush1.xpose.msra.mxu0 0.0
        %749 = vmatprep.subr.mxu0 0.0
        %750 = vmatpush1.xpose.msra.mxu0 0.0
        %751 = vmatprep.subr.mxu0 0.0
        %752 = vmatpush1.xpose.msra.mxu0 0.0
        %753 = vmatprep.subr.mxu0 0.0
        %754 = vmatpush1.xpose.msra.mxu0 0.0
        %755 = vmatprep.subr.mxu0 0.0
        %756 = vmatpush1.xpose.msra.mxu0 0.0
        %757 = vmatprep.subr.mxu0 0.0
        %758 = vmatpush1.xpose.msra.mxu0 0.0
        %759 = vmatprep.subr.mxu0 0.0
        %760 = vmatpush1.xpose.msra.mxu0 0.0
        %761 = vmatprep.subr.mxu0 0.0
        %762 = vmatpush1.xpose.msra.mxu0 0.0
        %763 = vmatprep.subr.mxu0 0.0
        %764 = vmatpush1.xpose.msra.mxu0 0.0
        %765 = vmatprep.subr.mxu0 0.0
        %766 = vmatpush1.xpose.msra.mxu0 0.0
        %767 = vmatprep.subr.mxu0 0.0
        %768 = vmatpush1.xpose.msra.mxu0 0.0
        %769 = vmatprep.subr.mxu0 0.0
        %770 = vmatpush1.xpose.msra.mxu0 0.0
        %771 = vmatprep.subr.mxu0 0.0
        %772 = vmatpush1.xpose.msra.mxu0 0.0
        %773 = vmatprep.subr.mxu0 0.0
        %774 = vmatpush1.xpose.msra.mxu0 0.0
        %775 = vmatprep.subr.mxu0 0.0
        %776 = vmatpush1.xpose.msra.mxu0 0.0
        %777 = vmatprep.subr.mxu0 0.0
        %778 = vmatpush1.xpose.msra.mxu0 0.0
        %779 = vmatprep.subr.mxu0 0.0
        %780 = vmatpush1.xpose.msra.mxu0 0.0
        %781 = vmatprep.subr.mxu0 0.0
        %782 = vmatpush1.xpose.msra.mxu0 0.0
        %783 = vmatprep.subr.mxu0 0.0
        %784 = vmatpush1.xpose.msra.mxu0 0.0
        %785 = vmatprep.subr.mxu0 0.0
        %786 = vmatpush1.xpose.msra.mxu0 0.0
        %787 = vmatprep.mubr.f32.mxu0 0.0
        %v788 = vand.u32 %v415, 4294901760
        %789 = vmatmul.mubr.f32.gmra.mrb[0].mxu0 %v788
        %v790 = vpop.f32.mrb[0].mxu0
        %v791 = vadd.f32 %v717, %v790
        %v792 = vpop.f32.mrb[0].mxu0
        %793 = vdwg.mxu0
        %794 = vmatprep.subr.mxu0 0.0
        %v795 = vand.u32 %v418, 4294901760
        %796 = vmatpush1.xpose.msra.mxu0 %v795
        %797 = vmatprep.subr.mxu0 0.0
        %798 = vmatpush1.xpose.msra.mxu0 0.0
        %799 = vmatprep.subr.mxu0 0.0
        %800 = vmatpush1.xpose.msra.mxu0 0.0
        %801 = vmatprep.subr.mxu0 0.0
        %802 = vmatpush1.xpose.msra.mxu0 0.0
        %803 = vmatprep.subr.mxu0 0.0
        %804 = vmatpush1.xpose.msra.mxu0 0.0
        %805 = vmatprep.subr.mxu0 0.0
        %806 = vmatpush1.xpose.msra.mxu0 0.0
        %807 = vmatprep.subr.mxu0 0.0
        %808 = vmatpush1.xpose.msra.mxu0 0.0
        %809 = vmatprep.subr.mxu0 0.0
        %810 = vmatpush1.xpose.msra.mxu0 0.0
        %811 = vmatprep.subr.mxu0 0.0
        %812 = vmatpush1.xpose.msra.mxu0 0.0
        %813 = vmatprep.subr.mxu0 0.0
        %814 = vmatpush1.xpose.msra.mxu0 0.0
        %815 = vmatprep.subr.mxu0 0.0
        %816 = vmatpush1.xpose.msra.mxu0 0.0
        %817 = vmatprep.subr.mxu0 0.0
        %818 = vmatpush1.xpose.msra.mxu0 0.0
        %819 = vmatprep.subr.mxu0 0.0
        %820 = vmatpush1.xpose.msra.mxu0 0.0
        %821 = vmatprep.subr.mxu0 0.0
        %822 = vmatpush1.xpose.msra.mxu0 0.0
        %823 = vmatprep.subr.mxu0 0.0
        %824 = vmatpush1.xpose.msra.mxu0 0.0
        %825 = vmatprep.subr.mxu0 0.0
        %826 = vmatpush1.xpose.msra.mxu0 0.0
        %827 = vmatprep.subr.mxu0 0.0
        %828 = vmatpush1.xpose.msra.mxu0 0.0
        %829 = vmatprep.subr.mxu0 0.0
        %830 = vmatpush1.xpose.msra.mxu0 0.0
        %831 = vmatprep.subr.mxu0 0.0
        %832 = vmatpush1.xpose.msra.mxu0 0.0
        %833 = vmatprep.subr.mxu0 0.0
        %834 = vmatpush1.xpose.msra.mxu0 0.0
        %835 = vmatprep.subr.mxu0 0.0
        %836 = vmatpush1.xpose.msra.mxu0 0.0
        %837 = vmatprep.subr.mxu0 0.0
        %838 = vmatpush1.xpose.msra.mxu0 0.0
        %839 = vmatprep.subr.mxu0 0.0
        %840 = vmatpush1.xpose.msra.mxu0 0.0
        %841 = vmatprep.subr.mxu0 0.0
        %842 = vmatpush1.xpose.msra.mxu0 0.0
        %843 = vmatprep.subr.mxu0 0.0
        %844 = vmatpush1.xpose.msra.mxu0 0.0
        %845 = vmatprep.subr.mxu0 0.0
        %846 = vmatpush1.xpose.msra.mxu0 0.0
        %847 = vmatprep.subr.mxu0 0.0
        %848 = vmatpush1.xpose.msra.mxu0 0.0
        %849 = vmatprep.subr.mxu0 0.0
        %850 = vmatpush1.xpose.msra.mxu0 0.0
        %851 = vmatprep.subr.mxu0 0.0
        %852 = vmatpush1.xpose.msra.mxu0 0.0
        %853 = vmatprep.subr.mxu0 0.0
        %854 = vmatpush1.xpose.msra.mxu0 0.0
        %855 = vmatprep.subr.mxu0 0.0
        %856 = vmatpush1.xpose.msra.mxu0 0.0
        %857 = vmatprep.subr.mxu0 0.0
        %858 = vmatpush1.xpose.msra.mxu0 0.0
        %859 = vmatprep.mubr.f32.mxu0 0.0
        %v860 = vand.u32 %v415, 4294901760
        %861 = vmatmul.mubr.f32.gmra.mrb[0].mxu0 %v860
        %v862 = vpop.f32.mrb[0].mxu0
        %v863 = vadd.f32 %v791, %v862
        %v864 = vpop.f32.mrb[0].mxu0
        %865 = vdwg.mxu0
        %vm866 = vnez %v411
        %v867 = vsel %vm866, 16843009, 0
        %v868 = vunpack.c.0.s8 %v867
        %vm869 = vcmp.ne.s32.totalorder %v868, 0
        %v870 = vsel %vm869, 1e-09, %v863
        %vm871 = vcmask 64512
        %v872 = vsel %vm871, %v870, -inf
        %873 = vmax.xlane.f32.xlu0 %v872
        %v874 = vpop.xlane.xlu0 %873
        %v875 = vsub.f32 %v870, %v874
        %v876 = vmul.f32 %v875, 1.442695
        %v877 = vpow.pop %v876
        %v878 = vsel %vm871, %v877, 0.0
        %879 = vadd.xlane.f32.xlu0 %v878
        %v880 = vpop.xlane.xlu0 %879
        %v881 = vrcp.pop %v880
        %v882 = vmul.f32 %v877, %v881
        %v884 = vsel %vm871, %v882, 0
        %886 = vmatprep.subr.mxu0 0.0
        %v887 = vand.u32 %v410, 4294901760
        %888 = vmatpush1.msra.mxu0 %v887
        %889 = vmatprep.subr.mxu0 0.0
        %890 = vmatpush1.msra.mxu0 0.0
        %891 = vmatprep.subr.mxu0 0.0
        %892 = vmatpush1.msra.mxu0 0.0
        %893 = vmatprep.subr.mxu0 0.0
        %894 = vmatpush1.msra.mxu0 0.0
        %895 = vmatprep.subr.mxu0 0.0
        %896 = vmatpush1.msra.mxu0 0.0
        %897 = vmatprep.subr.mxu0 0.0
        %898 = vmatpush1.msra.mxu0 0.0
        %899 = vmatprep.subr.mxu0 0.0
        %900 = vmatpush1.msra.mxu0 0.0
        %901 = vmatprep.subr.mxu0 0.0
        %902 = vmatpush1.msra.mxu0 0.0
        %903 = vmatprep.subr.mxu0 0.0
        %904 = vmatpush1.msra.mxu0 0.0
        %905 = vmatprep.subr.mxu0 0.0
        %906 = vmatpush1.msra.mxu0 0.0
        %907 = vmatprep.subr.mxu0 0.0
        %908 = vmatpush1.msra.mxu0 0.0
        %909 = vmatprep.subr.mxu0 0.0
        %910 = vmatpush1.msra.mxu0 0.0
        %911 = vmatprep.subr.mxu0 0.0
        %912 = vmatpush1.msra.mxu0 0.0
        %913 = vmatprep.subr.mxu0 0.0
        %914 = vmatpush1.msra.mxu0 0.0
        %915 = vmatprep.subr.mxu0 0.0
        %916 = vmatpush1.msra.mxu0 0.0
        %917 = vmatprep.subr.mxu0 0.0
        %918 = vmatpush1.msra.mxu0 0.0
        %919 = vmatprep.subr.mxu0 0.0
        %920 = vmatpush1.msra.mxu0 0.0
        %921 = vmatprep.subr.mxu0 0.0
        %922 = vmatpush1.msra.mxu0 0.0
        %923 = vmatprep.subr.mxu0 0.0
        %924 = vmatpush1.msra.mxu0 0.0
        %925 = vmatprep.subr.mxu0 0.0
        %926 = vmatpush1.msra.mxu0 0.0
        %927 = vmatprep.subr.mxu0 0.0
        %928 = vmatpush1.msra.mxu0 0.0
        %929 = vmatprep.subr.mxu0 0.0
        %930 = vmatpush1.msra.mxu0 0.0
        %931 = vmatprep.subr.mxu0 0.0
        %932 = vmatpush1.msra.mxu0 0.0
        %933 = vmatprep.subr.mxu0 0.0
        %934 = vmatpush1.msra.mxu0 0.0
        %935 = vmatprep.subr.mxu0 0.0
        %936 = vmatpush1.msra.mxu0 0.0
        %937 = vmatprep.subr.mxu0 0.0
        %938 = vmatpush1.msra.mxu0 0.0
        %939 = vmatprep.subr.mxu0 0.0
        %940 = vmatpush1.msra.mxu0 0.0
        %941 = vmatprep.subr.mxu0 0.0
        %942 = vmatpush1.msra.mxu0 0.0
        %943 = vmatprep.subr.mxu0 0.0
        %944 = vmatpush1.msra.mxu0 0.0
        %945 = vmatprep.subr.mxu0 0.0
        %946 = vmatpush1.msra.mxu0 0.0
        %947 = vmatprep.subr.mxu0 0.0
        %948 = vmatpush1.msra.mxu0 0.0
        %949 = vmatprep.subr.mxu0 0.0
        %950 = vmatpush1.msra.mxu0 0.0
        %951 = vmatprep.mubr.f32.mxu0 0.0
        %v952 = vand.u32 %v884, 4294901760
        %v953 = vsub.f32 %v884, %v952
        %v954 = vand.u32 %v953, 4294901760
        %v955 = vsub.f32 %v953, %v954
        %v956 = vand.u32 %v955, 4294901760
        %957 = vmatmul.mubr.f32.gmra.mrb[0].mxu0 %v956
        %v958 = vpop.f32.mrb[0].mxu0
        %v959 = vadd.f32 0.0, %v958
        %v960 = vpop.f32.mrb[0].mxu0
        %961 = vdwg.mxu0
        %962 = vmatprep.subr.mxu0 0.0
        %v963 = vand.u32 %v410, 4294901760
        %v964 = vsub.f32 %v410, %v963
        %v965 = vand.u32 %v964, 4294901760
        %v966 = vsub.f32 %v964, %v965
        %v967 = vand.u32 %v966, 4294901760
        %968 = vmatpush1.msra.mxu0 %v967
        %969 = vmatprep.subr.mxu0 0.0
        %970 = vmatpush1.msra.mxu0 0.0
        %971 = vmatprep.subr.mxu0 0.0
        %972 = vmatpush1.msra.mxu0 0.0
        %973 = vmatprep.subr.mxu0 0.0
        %974 = vmatpush1.msra.mxu0 0.0
        %975 = vmatprep.subr.mxu0 0.0
        %976 = vmatpush1.msra.mxu0 0.0
        %977 = vmatprep.subr.mxu0 0.0
        %978 = vmatpush1.msra.mxu0 0.0
        %979 = vmatprep.subr.mxu0 0.0
        %980 = vmatpush1.msra.mxu0 0.0
        %981 = vmatprep.subr.mxu0 0.0
        %982 = vmatpush1.msra.mxu0 0.0
        %983 = vmatprep.subr.mxu0 0.0
        %984 = vmatpush1.msra.mxu0 0.0
        %985 = vmatprep.subr.mxu0 0.0
        %986 = vmatpush1.msra.mxu0 0.0
        %987 = vmatprep.subr.mxu0 0.0
        %988 = vmatpush1.msra.mxu0 0.0
        %989 = vmatprep.subr.mxu0 0.0
        %990 = vmatpush1.msra.mxu0 0.0
        %991 = vmatprep.subr.mxu0 0.0
        %992 = vmatpush1.msra.mxu0 0.0
        %993 = vmatprep.subr.mxu0 0.0
        %994 = vmatpush1.msra.mxu0 0.0
        %995 = vmatprep.subr.mxu0 0.0
        %996 = vmatpush1.msra.mxu0 0.0
        %997 = vmatprep.subr.mxu0 0.0
        %998 = vmatpush1.msra.mxu0 0.0
        %999 = vmatprep.subr.mxu0 0.0
        %1000 = vmatpush1.msra.mxu0 0.0
        %1001 = vmatprep.subr.mxu0 0.0
        %1002 = vmatpush1.msra.mxu0 0.0
        %1003 = vmatprep.subr.mxu0 0.0
        %1004 = vmatpush1.msra.mxu0 0.0
        %1005 = vmatprep.subr.mxu0 0.0
        %1006 = vmatpush1.msra.mxu0 0.0
        %1007 = vmatprep.subr.mxu0 0.0
        %1008 = vmatpush1.msra.mxu0 0.0
        %1009 = vmatprep.subr.mxu0 0.0
        %1010 = vmatpush1.msra.mxu0 0.0
        %1011 = vmatprep.subr.mxu0 0.0
        %1012 = vmatpush1.msra.mxu0 0.0
        %1013 = vmatprep.subr.mxu0 0.0
        %1014 = vmatpush1.msra.mxu0 0.0
        %1015 = vmatprep.subr.mxu0 0.0
        %1016 = vmatpush1.msra.mxu0 0.0
        %1017 = vmatprep.subr.mxu0 0.0
        %1018 = vmatpush1.msra.mxu0 0.0
        %1019 = vmatprep.subr.mxu0 0.0
        %1020 = vmatpush1.msra.mxu0 0.0
        %1021 = vmatprep.subr.mxu0 0.0
        %1022 = vmatpush1.msra.mxu0 0.0
        %1023 = vmatprep.subr.mxu0 0.0
        %1024 = vmatpush1.msra.mxu0 0.0
        %1025 = vmatprep.subr.mxu0 0.0
        %1026 = vmatpush1.msra.mxu0 0.0
        %1027 = vmatprep.subr.mxu0 0.0
        %1028 = vmatpush1.msra.mxu0 0.0
        %1029 = vmatprep.subr.mxu0 0.0
        %1030 = vmatpush1.msra.mxu0 0.0
        %1031 = vmatprep.mubr.f32.mxu0 0.0
        %v1032 = vand.u32 %v884, 4294901760
        %1033 = vmatmul.mubr.f32.gmra.mrb[0].mxu0 %v1032
        %v1034 = vpop.f32.mrb[0].mxu0
        %v1035 = vadd.f32 %v959, %v1034
        %v1036 = vpop.f32.mrb[0].mxu0
        %1037 = vdwg.mxu0
        %1038 = vmatprep.subr.mxu0 0.0
        %v1039 = vand.u32 %v410, 4294901760
        %v1040 = vsub.f32 %v410, %v1039
        %1041 = vmatpush1.msra.mxu0 %v1040
        %1042 = vmatprep.subr.mxu0 0.0
        %1043 = vmatpush1.msra.mxu0 0.0
        %1044 = vmatprep.subr.mxu0 0.0
        %1045 = vmatpush1.msra.mxu0 0.0
        %1046 = vmatprep.subr.mxu0 0.0
        %1047 = vmatpush1.msra.mxu0 0.0
        %1048 = vmatprep.subr.mxu0 0.0
        %1049 = vmatpush1.msra.mxu0 0.0
        %1050 = vmatprep.subr.mxu0 0.0
        %1051 = vmatpush1.msra.mxu0 0.0
        %1052 = vmatprep.subr.mxu0 0.0
        %1053 = vmatpush1.msra.mxu0 0.0
        %1054 = vmatprep.subr.mxu0 0.0
        %1055 = vmatpush1.msra.mxu0 0.0
        %1056 = vmatprep.subr.mxu0 0.0
        %1057 = vmatpush1.msra.mxu0 0.0
        %1058 = vmatprep.subr.mxu0 0.0
        %1059 = vmatpush1.msra.mxu0 0.0
        %1060 = vmatprep.subr.mxu0 0.0
        %1061 = vmatpush1.msra.mxu0 0.0
        %1062 = vmatprep.subr.mxu0 0.0
        %1063 = vmatpush1.msra.mxu0 0.0
        %1064 = vmatprep.subr.mxu0 0.0
        %1065 = vmatpush1.msra.mxu0 0.0
        %1066 = vmatprep.subr.mxu0 0.0
        %1067 = vmatpush1.msra.mxu0 0.0
        %1068 = vmatprep.subr.mxu0 0.0
        %1069 = vmatpush1.msra.mxu0 0.0
        %1070 = vmatprep.subr.mxu0 0.0
        %1071 = vmatpush1.msra.mxu0 0.0
        %1072 = vmatprep.subr.mxu0 0.0
        %1073 = vmatpush1.msra.mxu0 0.0
        %1074 = vmatprep.subr.mxu0 0.0
        %1075 = vmatpush1.msra.mxu0 0.0
        %1076 = vmatprep.subr.mxu0 0.0
        %1077 = vmatpush1.msra.mxu0 0.0
        %1078 = vmatprep.subr.mxu0 0.0
        %1079 = vmatpush1.msra.mxu0 0.0
        %1080 = vmatprep.subr.mxu0 0.0
        %1081 = vmatpush1.msra.mxu0 0.0
        %1082 = vmatprep.subr.mxu0 0.0
        %1083 = vmatpush1.msra.mxu0 0.0
        %1084 = vmatprep.subr.mxu0 0.0
        %1085 = vmatpush1.msra.mxu0 0.0
        %1086 = vmatprep.subr.mxu0 0.0
        %1087 = vmatpush1.msra.mxu0 0.0
        %1088 = vmatprep.subr.mxu0 0.0
        %1089 = vmatpush1.msra.mxu0 0.0
        %1090 = vmatprep.subr.mxu0 0.0
        %1091 = vmatpush1.msra.mxu0 0.0
        %1092 = vmatprep.subr.mxu0 0.0
        %1093 = vmatpush1.msra.mxu0 0.0
        %1094 = vmatprep.subr.mxu0 0.0
        %1095 = vmatpush1.msra.mxu0 0.0
        %1096 = vmatprep.subr.mxu0 0.0
        %1097 = vmatpush1.msra.mxu0 0.0
        %1098 = vmatprep.subr.mxu0 0.0
        %1099 = vmatpush1.msra.mxu0 0.0
        %1100 = vmatprep.subr.mxu0 0.0
        %1101 = vmatpush1.msra.mxu0 0.0
        %1102 = vmatprep.subr.mxu0 0.0
        %1103 = vmatpush1.msra.mxu0 0.0
        %1104 = vmatprep.mubr.f32.mxu0 0.0
        %v1105 = vand.u32 %v884, 4294901760
        %v1106 = vsub.f32 %v884, %v1105
        %1107 = vmatmul.mubr.f32.gmra.mrb[0].mxu0 %v1106
        %v1108 = vpop.f32.mrb[0].mxu0
        %v1109 = vadd.f32 %v1035, %v1108
        %v1110 = vpop.f32.mrb[0].mxu0
        %1111 = vdwg.mxu0
        %1112 = vmatprep.subr.mxu0 0.0
        %v1113 = vand.u32 %v410, 4294901760
        %1114 = vmatpush1.msra.mxu0 %v1113
        %1115 = vmatprep.subr.mxu0 0.0
        %1116 = vmatpush1.msra.mxu0 0.0
        %1117 = vmatprep.subr.mxu0 0.0
        %1118 = vmatpush1.msra.mxu0 0.0
        %1119 = vmatprep.subr.mxu0 0.0
        %1120 = vmatpush1.msra.mxu0 0.0
        %1121 = vmatprep.subr.mxu0 0.0
        %1122 = vmatpush1.msra.mxu0 0.0
        %1123 = vmatprep.subr.mxu0 0.0
        %1124 = vmatpush1.msra.mxu0 0.0
        %1125 = vmatprep.subr.mxu0 0.0
        %1126 = vmatpush1.msra.mxu0 0.0
        %1127 = vmatprep.subr.mxu0 0.0
        %1128 = vmatpush1.msra.mxu0 0.0
        %1129 = vmatprep.subr.mxu0 0.0
        %1130 = vmatpush1.msra.mxu0 0.0
        %1131 = vmatprep.subr.mxu0 0.0
        %1132 = vmatpush1.msra.mxu0 0.0
        %1133 = vmatprep.subr.mxu0 0.0
        %1134 = vmatpush1.msra.mxu0 0.0
        %1135 = vmatprep.subr.mxu0 0.0
        %1136 = vmatpush1.msra.mxu0 0.0
        %1137 = vmatprep.subr.mxu0 0.0
        %1138 = vmatpush1.msra.mxu0 0.0
        %1139 = vmatprep.subr.mxu0 0.0
        %1140 = vmatpush1.msra.mxu0 0.0
        %1141 = vmatprep.subr.mxu0 0.0
        %1142 = vmatpush1.msra.mxu0 0.0
        %1143 = vmatprep.subr.mxu0 0.0
        %1144 = vmatpush1.msra.mxu0 0.0
        %1145 = vmatprep.subr.mxu0 0.0
        %1146 = vmatpush1.msra.mxu0 0.0
        %1147 = vmatprep.subr.mxu0 0.0
        %1148 = vmatpush1.msra.mxu0 0.0
        %1149 = vmatprep.subr.mxu0 0.0
        %1150 = vmatpush1.msra.mxu0 0.0
        %1151 = vmatprep.subr.mxu0 0.0
        %1152 = vmatpush1.msra.mxu0 0.0
        %1153 = vmatprep.subr.mxu0 0.0
        %1154 = vmatpush1.msra.mxu0 0.0
        %1155 = vmatprep.subr.mxu0 0.0
        %1156 = vmatpush1.msra.mxu0 0.0
        %1157 = vmatprep.subr.mxu0 0.0
        %1158 = vmatpush1.msra.mxu0 0.0
        %1159 = vmatprep.subr.mxu0 0.0
        %1160 = vmatpush1.msra.mxu0 0.0
        %1161 = vmatprep.subr.mxu0 0.0
        %1162 = vmatpush1.msra.mxu0 0.0
        %1163 = vmatprep.subr.mxu0 0.0
        %1164 = vmatpush1.msra.mxu0 0.0
        %1165 = vmatprep.subr.mxu0 0.0
        %1166 = vmatpush1.msra.mxu0 0.0
        %1167 = vmatprep.subr.mxu0 0.0
        %1168 = vmatpush1.msra.mxu0 0.0
        %1169 = vmatprep.subr.mxu0 0.0
        %1170 = vmatpush1.msra.mxu0 0.0
        %1171 = vmatprep.subr.mxu0 0.0
        %1172 = vmatpush1.msra.mxu0 0.0
        %1173 = vmatprep.subr.mxu0 0.0
        %1174 = vmatpush1.msra.mxu0 0.0
        %1175 = vmatprep.subr.mxu0 0.0
        %1176 = vmatpush1.msra.mxu0 0.0
        %1177 = vmatprep.mubr.f32.mxu0 0.0
        %v1178 = vand.u32 %v884, 4294901760
        %v1179 = vsub.f32 %v884, %v1178
        %v1180 = vand.u32 %v1179, 4294901760
        %1181 = vmatmul.mubr.f32.gmra.mrb[0].mxu0 %v1180
        %v1182 = vpop.f32.mrb[0].mxu0
        %v1183 = vadd.f32 %v1109, %v1182
        %v1184 = vpop.f32.mrb[0].mxu0
        %1185 = vdwg.mxu0
        %1186 = vmatprep.subr.mxu0 0.0
        %v1187 = vand.u32 %v410, 4294901760
        %v1188 = vsub.f32 %v410, %v1187
        %v1189 = vand.u32 %v1188, 4294901760
        %1190 = vmatpush1.msra.mxu0 %v1189
        %1191 = vmatprep.subr.mxu0 0.0
        %1192 = vmatpush1.msra.mxu0 0.0
        %1193 = vmatprep.subr.mxu0 0.0
        %1194 = vmatpush1.msra.mxu0 0.0
        %1195 = vmatprep.subr.mxu0 0.0
        %1196 = vmatpush1.msra.mxu0 0.0
        %1197 = vmatprep.subr.mxu0 0.0
        %1198 = vmatpush1.msra.mxu0 0.0
        %1199 = vmatprep.subr.mxu0 0.0
        %1200 = vmatpush1.msra.mxu0 0.0
        %1201 = vmatprep.subr.mxu0 0.0
        %1202 = vmatpush1.msra.mxu0 0.0
        %1203 = vmatprep.subr.mxu0 0.0
        %1204 = vmatpush1.msra.mxu0 0.0
        %1205 = vmatprep.subr.mxu0 0.0
        %1206 = vmatpush1.msra.mxu0 0.0
        %1207 = vmatprep.subr.mxu0 0.0
        %1208 = vmatpush1.msra.mxu0 0.0
        %1209 = vmatprep.subr.mxu0 0.0
        %1210 = vmatpush1.msra.mxu0 0.0
        %1211 = vmatprep.subr.mxu0 0.0
        %1212 = vmatpush1.msra.mxu0 0.0
        %1213 = vmatprep.subr.mxu0 0.0
        %1214 = vmatpush1.msra.mxu0 0.0
        %1215 = vmatprep.subr.mxu0 0.0
        %1216 = vmatpush1.msra.mxu0 0.0
        %1217 = vmatprep.subr.mxu0 0.0
        %1218 = vmatpush1.msra.mxu0 0.0
        %1219 = vmatprep.subr.mxu0 0.0
        %1220 = vmatpush1.msra.mxu0 0.0
        %1221 = vmatprep.subr.mxu0 0.0
        %1222 = vmatpush1.msra.mxu0 0.0
        %1223 = vmatprep.subr.mxu0 0.0
        %1224 = vmatpush1.msra.mxu0 0.0
        %1225 = vmatprep.subr.mxu0 0.0
        %1226 = vmatpush1.msra.mxu0 0.0
        %1227 = vmatprep.subr.mxu0 0.0
        %1228 = vmatpush1.msra.mxu0 0.0
        %1229 = vmatprep.subr.mxu0 0.0
        %1230 = vmatpush1.msra.mxu0 0.0
        %1231 = vmatprep.subr.mxu0 0.0
        %1232 = vmatpush1.msra.mxu0 0.0
        %1233 = vmatprep.subr.mxu0 0.0
        %1234 = vmatpush1.msra.mxu0 0.0
        %1235 = vmatprep.subr.mxu0 0.0
        %1236 = vmatpush1.msra.mxu0 0.0
        %1237 = vmatprep.subr.mxu0 0.0
        %1238 = vmatpush1.msra.mxu0 0.0
        %1239 = vmatprep.subr.mxu0 0.0
        %1240 = vmatpush1.msra.mxu0 0.0
        %1241 = vmatprep.subr.mxu0 0.0
        %1242 = vmatpush1.msra.mxu0 0.0
        %1243 = vmatprep.subr.mxu0 0.0
        %1244 = vmatpush1.msra.mxu0 0.0
        %1245 = vmatprep.subr.mxu0 0.0
        %1246 = vmatpush1.msra.mxu0 0.0
        %1247 = vmatprep.subr.mxu0 0.0
        %1248 = vmatpush1.msra.mxu0 0.0
        %1249 = vmatprep.subr.mxu0 0.0
        %1250 = vmatpush1.msra.mxu0 0.0
        %1251 = vmatprep.subr.mxu0 0.0
        %1252 = vmatpush1.msra.mxu0 0.0
        %1253 = vmatprep.mubr.f32.mxu0 0.0
        %v1254 = vand.u32 %v884, 4294901760
        %1255 = vmatmul.mubr.f32.gmra.mrb[0].mxu0 %v1254
        %v1256 = vpop.f32.mrb[0].mxu0
        %v1257 = vadd.f32 %v1183, %v1256
        %v1258 = vpop.f32.mrb[0].mxu0
        %1259 = vdwg.mxu0
        %1260 = vmatprep.subr.mxu0 0.0
        %v1261 = vand.u32 %v410, 4294901760
        %1262 = vmatpush1.msra.mxu0 %v1261
        %1263 = vmatprep.subr.mxu0 0.0
        %1264 = vmatpush1.msra.mxu0 0.0
        %1265 = vmatprep.subr.mxu0 0.0
        %1266 = vmatpush1.msra.mxu0 0.0
        %1267 = vmatprep.subr.mxu0 0.0
        %1268 = vmatpush1.msra.mxu0 0.0
        %1269 = vmatprep.subr.mxu0 0.0
        %1270 = vmatpush1.msra.mxu0 0.0
        %1271 = vmatprep.subr.mxu0 0.0
        %1272 = vmatpush1.msra.mxu0 0.0
        %1273 = vmatprep.subr.mxu0 0.0
        %1274 = vmatpush1.msra.mxu0 0.0
        %1275 = vmatprep.subr.mxu0 0.0
        %1276 = vmatpush1.msra.mxu0 0.0
        %1277 = vmatprep.subr.mxu0 0.0
        %1278 = vmatpush1.msra.mxu0 0.0
        %1279 = vmatprep.subr.mxu0 0.0
        %1280 = vmatpush1.msra.mxu0 0.0
        %1281 = vmatprep.subr.mxu0 0.0
        %1282 = vmatpush1.msra.mxu0 0.0
        %1283 = vmatprep.subr.mxu0 0.0
        %1284 = vmatpush1.msra.mxu0 0.0
        %1285 = vmatprep.subr.mxu0 0.0
        %1286 = vmatpush1.msra.mxu0 0.0
        %1287 = vmatprep.subr.mxu0 0.0
        %1288 = vmatpush1.msra.mxu0 0.0
        %1289 = vmatprep.subr.mxu0 0.0
        %1290 = vmatpush1.msra.mxu0 0.0
        %1291 = vmatprep.subr.mxu0 0.0
        %1292 = vmatpush1.msra.mxu0 0.0
        %1293 = vmatprep.subr.mxu0 0.0
        %1294 = vmatpush1.msra.mxu0 0.0
        %1295 = vmatprep.subr.mxu0 0.0
        %1296 = vmatpush1.msra.mxu0 0.0
        %1297 = vmatprep.subr.mxu0 0.0
        %1298 = vmatpush1.msra.mxu0 0.0
        %1299 = vmatprep.subr.mxu0 0.0
        %1300 = vmatpush1.msra.mxu0 0.0
        %1301 = vmatprep.subr.mxu0 0.0
        %1302 = vmatpush1.msra.mxu0 0.0
        %1303 = vmatprep.subr.mxu0 0.0
        %1304 = vmatpush1.msra.mxu0 0.0
        %1305 = vmatprep.subr.mxu0 0.0
        %1306 = vmatpush1.msra.mxu0 0.0
        %1307 = vmatprep.subr.mxu0 0.0
        %1308 = vmatpush1.msra.mxu0 0.0
        %1309 = vmatprep.subr.mxu0 0.0
        %1310 = vmatpush1.msra.mxu0 0.0
        %1311 = vmatprep.subr.mxu0 0.0
        %1312 = vmatpush1.msra.mxu0 0.0
        %1313 = vmatprep.subr.mxu0 0.0
        %1314 = vmatpush1.msra.mxu0 0.0
        %1315 = vmatprep.subr.mxu0 0.0
        %1316 = vmatpush1.msra.mxu0 0.0
        %1317 = vmatprep.subr.mxu0 0.0
        %1318 = vmatpush1.msra.mxu0 0.0
        %1319 = vmatprep.subr.mxu0 0.0
        %1320 = vmatpush1.msra.mxu0 0.0
        %1321 = vmatprep.subr.mxu0 0.0
        %1322 = vmatpush1.msra.mxu0 0.0
        %1323 = vmatprep.subr.mxu0 0.0
        %1324 = vmatpush1.msra.mxu0 0.0
        %1325 = vmatprep.mubr.f32.mxu0 0.0
        %v1326 = vand.u32 %v884, 4294901760
        %1327 = vmatmul.mubr.f32.gmra.mrb[0].mxu0 %v1326
        %v1328 = vpop.f32.mrb[0].mxu0
        %v1329 = vadd.f32 %v1257, %v1328
        %v1330 = vpop.f32.mrb[0].mxu0
        %1331 = vdwg.mxu0
        %1332 = vst.msk [vmem:[%s387] sm:$0xff] %vm413, %v1329
        %1333 = vst.msk [vmem:[%s394] sm:$0xff] %vm871, %v882
        %s1334 = sand.u32 %s176, 1
        %s1335 = scalar_lea.sflag [#allocation4], %s1334
        %s1336 = sand.u32 %s176, 1
        %s1337 = smul.addr %s1336, 8
        %s1338 = scalar_lea.vmem [#allocation8], %s1337
        %s1339 = sand.u32 %s206, 1
        %s1340 = scalar_lea.sflag [#allocation10], %s1339
        %s1341 = sand.u32 %s206, 1
        %s1342 = smul.addr %s1341, 8
        %s1343 = scalar_lea.vmem [#allocation9], %s1342
        // Predicated region
        $region49: #{tpu_custom_call.1} parent=35 // pred_check
          %p1344 = pneg %p186
        $region50: #{tpu_custom_call.1} parent=35 // pred_check_branch
          %1346 = sbr.rel (%p1344) target = $region52
        $region51: #{tpu_custom_call.1} parent=35 // pred_region
          %s1348 = ssub.s32 128, 128
          %1349 = vsyncadd %s1335, %s1348
          %s1350 = sadd.s32 %s36, %s35
          %s1351 = smul.addr %s34, 2
          %s1352 = sadd.s32 %s1350, %s1351
          %s1353 = smul.addr %s1352, 128
          %s1354 = scalar_lea.hbm %s4, %s1353
          %s1356 = sshll.u32 %s1338, 4
          %s1357 = int_to_ptr.vmem [resolvable:$true] %s1356
          %1359 = dma.vmem_to_hbm [thread:$0]  %s1357, 128, %s1354, %s1335
        $region52: #{tpu_custom_call.1} parent=35 // pred_fallthru
          _
        // Predicated region
        $region53: #{tpu_custom_call.1} parent=35 // pred_check
          %p1360 = pneg %p216
        $region54: #{tpu_custom_call.1} parent=35 // pred_check_branch
          %1362 = sbr.rel (%p1360) target = $region56
        $region55: #{tpu_custom_call.1} parent=35 // pred_region
          %s1364 = ssub.s32 128, 128
          %1365 = vsyncadd %s1340, %s1364
          %s1366 = sadd.s32 %s36, %s35
          %s1367 = smul.addr %s34, 2
          %s1368 = sadd.s32 %s1366, %s1367
          %s1369 = smul.addr %s1368, 128
          %s1370 = scalar_lea.hbm %s5, %s1369
          %s1372 = sshll.u32 %s1343, 4
          %s1373 = int_to_ptr.vmem [resolvable:$true] %s1372
          %1375 = dma.vmem_to_hbm [thread:$0]  %s1373, 128, %s1370, %s1340
        $region56: #{tpu_custom_call.1} parent=35 // pred_fallthru
          _
      $region36: #{tpu_custom_call.1} parent=5 // pred_fallthru
        _
      %p1376 = scmp.le.s32.totalorder 2, %s24
      // Predicated region
      $region57: #{tpu_custom_call.1} parent=5 // pred_check
        %p1377 = pneg %p1376
      $region58: #{tpu_custom_call.1} parent=5 // pred_check_branch
        %1379 = sbr.rel (%p1377) target = $region60
      $region59: #{tpu_custom_call.1} parent=5 // pred_region
        %s1380 = ssub.s32 %s24, 2
        // Predicated region
        $region61: #{tpu_custom_call.1} parent=59 // pred_check
          %p1381 = pneg %p192
        $region62: #{tpu_custom_call.1} parent=59 // pred_check_branch
          %1383 = sbr.rel (%p1381) target = $region64
        $region63: #{tpu_custom_call.1} parent=59 // pred_region
          %s1384 = sand.u32 %s177, 1
          %s1385 = scalar_lea.sflag [#allocation4], %s1384
          %s1386 = sand.u32 %s177, 1
          %s1387 = smul.addr %s1386, 8
          %s1388 = scalar_lea.vmem [#allocation8], %s1387
          %1389 = dma.done %s1385, 128
        $region64: #{tpu_custom_call.1} parent=59 // pred_fallthru
          _
        // Predicated region
        $region65: #{tpu_custom_call.1} parent=59 // pred_check
          %p1390 = pneg %p222
        $region66: #{tpu_custom_call.1} parent=59 // pred_check_branch
          %1392 = sbr.rel (%p1390) target = $region68
        $region67: #{tpu_custom_call.1} parent=59 // pred_region
          %s1393 = sand.u32 %s207, 1
          %s1394 = scalar_lea.sflag [#allocation10], %s1393
          %s1395 = sand.u32 %s207, 1
          %s1396 = smul.addr %s1395, 8
          %s1397 = scalar_lea.vmem [#allocation9], %s1396
          %1398 = dma.done %s1394, 128
        $region68: #{tpu_custom_call.1} parent=59 // pred_fallthru
          _
      $region60: #{tpu_custom_call.1} parent=5 // pred_fallthru
        _
    $region6: #{tpu_custom_call.1} parent=1 // loop_footer
      %s28 = sadd.s32 1, %s24
    $region7: #{tpu_custom_call.1} parent=1 // loop_footer_branch
      %23 = sbr.rel target = $region3
    $region8: #{tpu_custom_call.1} parent=1 // loop_exit
      _
    %1399 = vsyncpa [#allocation3], 1
    %s1400 = scalar_lea.sflag [#allocation3], 1
    %1401 = vsyncpa %s1400, 1
    %1402 = vsyncpa [#allocation6], 1
    %s1403 = scalar_lea.sflag [#allocation6], 1
    %1404 = vsyncpa %s1403, 1
    %1405 = vsyncpa [#allocation4], 1
    %s1406 = scalar_lea.sflag [#allocation4], 1
    %1407 = vsyncpa %s1406, 1
    %1408 = vsyncpa [#allocation10], 1
    %s1409 = scalar_lea.sflag [#allocation10], 1
    %1410 = vsyncpa %s1409, 1

</llo_original>
